<compile_context>
chip_gen: v7x
topology: tpu7x:2x2x1
jax: 0.10.0
libtpu: 0.0.40
codegen_flags: <defaults>
</compile_context>

<pallas_src>
import functools
from typing import NamedTuple, Tuple

import numpy as np
import jax
import jax.numpy as jnp
from jax.experimental import pallas as pl
from jax.experimental.pallas import tpu as pltpu

_EPS = float(np.finfo(np.float32).eps)
_NEG_SLOPE = 0.01          # torch.nn.LeakyReLU default
_LANE = 128
_SUBLANE = 8
_MAX_TILE_B = 512


class Meta(NamedTuple):
    """Static (hashable) layout metadata for the packed parameters."""
    f_pad: int                          # padded input feature count
    num_heads: int                      # discrete heads + (1 if continuous)
    head_offsets: Tuple[int, ...]       # column offset of each discrete head
    head_widths: Tuple[int, ...]
    out_pad: int                        # padded slab width (multiple of 128)
    n_discrete: int
    n_continuous: int                   # n (0 if no continuous head)
    cont_mean_offset: int               # 128-aligned slab offset of mean block
    cont_var_offset: int                # 128-aligned slab offset of var block
    cont_pad: int                       # round_up(n, 128)


def _round_up(v, m):
    return (v + m - 1) // m * m


def _leaky_relu(x):
    return jnp.where(x >= 0, x, jnp.float32(_NEG_SLOPE) * x)


def _softplus(x):
    # numerically stable: max(x,0) + log1p(exp(-|x|))
    return jnp.maximum(x, 0.0) + jnp.log1p(jnp.exp(-jnp.abs(x)))


# ---------------------------------------------------------------------------
# Single fused kernel: trunk + all heads + continuous epilogue
# ---------------------------------------------------------------------------
def _fused_kernel(x_ref, w0_ref, b0_ref, w1_ref, b1_ref,
                  wh_ref, bh_ref, w2_ref, b2_ref,
                  lo_ref, rg_ref, out_ref, *,
                  n_cont, mean_off, var_off, cont_pad):
    f32 = jnp.float32

    # ---- shared trunk:  F -> 256 -> 128 (LeakyReLU after each) -------------
    # bf16 MXU inputs, f32 accumulation, f32 elementwise.
    s = jnp.dot(x_ref[...], w0_ref[...], preferred_element_type=f32)
    s = _leaky_relu(s + b0_ref[...]).astype(jnp.bfloat16)
    s = jnp.dot(s, w1_ref[...], preferred_element_type=f32)
    s = _leaky_relu(s + b1_ref[...]).astype(jnp.bfloat16)

    # ---- all head hidden layers in one wide matmul: (B,128)@(128,128*H) ----
    h = jnp.dot(s, wh_ref[...], preferred_element_type=f32)
    h = _leaky_relu(h + bh_ref[...]).astype(jnp.bfloat16)

    # ---- all head output layers via block-diagonal weights -----------------
    # y[:, off_i:off_i+w_i] == h_i @ w2_i + b2_i  (lane-dense padded slab)
    y = jnp.dot(h, w2_ref[...], preferred_element_type=f32) + b2_ref[...]

    if n_cont > 0:
        # Discrete logits region: plain, lane-aligned (mean_off is a multiple
        # of 128) copy — no transcendentals touch it.
        if mean_off > 0:
            out_ref[:, :mean_off] = y[:, :mean_off].astype(out_ref.dtype)
        # Mean block: tanh only on its own 128-padded, lane-aligned slice.
        m = y[:, mean_off:mean_off + cont_pad]
        mean_val = lo_ref[...] + (jnp.tanh(m) + f32(0.5)) * rg_ref[...]
        out_ref[:, mean_off:mean_off + cont_pad] = mean_val.astype(out_ref.dtype)
        # Var block: softplus only on its own 128-padded, lane-aligned slice.
        v = y[:, var_off:var_off + cont_pad]
        var_val = _softplus(v) + f32(_EPS)
        out_ref[:, var_off:var_off + cont_pad] = var_val.astype(out_ref.dtype)
    else:
        out_ref[...] = y.astype(out_ref.dtype)


def _fused_call(meta, a, x_padded, tile_b):
    Bp, Fp = x_padded.shape
    H = meta.num_heads
    out_pad = meta.out_pad
    grid = (Bp // tile_b,)

    kernel = functools.partial(_fused_kernel,
                               n_cont=meta.n_continuous,
                               mean_off=meta.cont_mean_offset,
                               var_off=meta.cont_var_offset,
                               cont_pad=meta.cont_pad)

    rep = lambda i: (0, 0)  # weights/biases stay VMEM-resident across tiles

    # ---- cost estimate ------------------------------------------------------
    flops = 2 * Bp * (Fp * 256 + 256 * 128 + 128 * 128 * H + 128 * H * out_pad)
    transcendentals = (3 * Bp * meta.cont_pad) if meta.n_continuous > 0 else 0
    weight_bytes = sum(int(a[k].size) * a[k].dtype.itemsize
                       for k in ("w0", "b0", "w1", "b1", "wh", "bh",
                                 "w2", "b2", "lower", "range"))
    io_bytes = 4 * Bp * out_pad + 2 * Bp * Fp
    bytes_accessed = weight_bytes + io_bytes

    # ---- explicit VMEM budget (scoped default is 16 MiB on v5e) ------------
    act_bytes = tile_b * (256 + 128 * H + 3 * out_pad) * 4
    tile_io_bytes = 2 * tile_b * (Fp * 2 + out_pad * 4)    # double-buffered x/out
    est = 2 * weight_bytes + act_bytes + tile_io_bytes
    vmem_limit = int(min(max(2 * est, 32 << 20), 60 << 20))  # stay under v7x 64 MiB

    return pl.pallas_call(
        kernel,
        out_shape=jax.ShapeDtypeStruct((Bp, out_pad), jnp.float32),
        grid=grid,
        in_specs=[
            pl.BlockSpec((tile_b, Fp), lambda i: (i, 0)),          # x
            pl.BlockSpec(a["w0"].shape, rep), pl.BlockSpec(a["b0"].shape, rep),
            pl.BlockSpec(a["w1"].shape, rep), pl.BlockSpec(a["b1"].shape, rep),
            pl.BlockSpec(a["wh"].shape, rep), pl.BlockSpec(a["bh"].shape, rep),
            pl.BlockSpec(a["w2"].shape, rep), pl.BlockSpec(a["b2"].shape, rep),
            pl.BlockSpec(a["lower"].shape, rep),
            pl.BlockSpec(a["range"].shape, rep),
        ],
        out_specs=pl.BlockSpec((tile_b, out_pad), lambda i: (i, 0)),
        compiler_params=pltpu.CompilerParams(
            dimension_semantics=("parallel",),
            vmem_limit_bytes=vmem_limit),
        cost_estimate=pl.CostEstimate(flops=flops,
                                      transcendentals=transcendentals,
                                      bytes_accessed=bytes_accessed),
    )(x_padded, a["w0"], a["b0"], a["w1"], a["b1"],
      a["wh"], a["bh"], a["w2"], a["b2"], a["lower"], a["range"])


# ---------------------------------------------------------------------------
# Forward pass (one fused kernel + XLA slicing, all under jit)
# ---------------------------------------------------------------------------
@functools.partial(jax.jit, static_argnums=(0,))
def forward(meta, arrays, x):
    B, F = x.shape
    # Pad batch to a sublane multiple; always use >= 2 balanced tiles when
    # there is enough work so v7x's two TensorCores both get a share of the
    # "parallel" grid axis, and never round Bp up to a full _MAX_TILE_B.
    Bmin = _round_up(max(B, _SUBLANE), _SUBLANE)
    if Bmin >= 2 * _SUBLANE:
        num_tiles = max((Bmin + _MAX_TILE_B - 1) // _MAX_TILE_B, 2)
    else:
        num_tiles = 1
    tile_b = _round_up((Bmin + num_tiles - 1) // num_tiles, _SUBLANE)
    Bp = tile_b * num_tiles

    x_p = jnp.pad(x.astype(jnp.bfloat16),
                  ((0, Bp - B), (0, meta.f_pad - F)))

    slab = _fused_call(meta, arrays, x_p, tile_b)[:B]

    outputs = {"discrete": []}
    for i in range(meta.n_discrete):
        off, w = meta.head_offsets[i], meta.head_widths[i]
        outputs["discrete"].append(slab[:, off:off + w])
    if meta.n_continuous > 0:
        n = meta.n_continuous
        mo, vo = meta.cont_mean_offset, meta.cont_var_offset
        outputs["continuous"] = (slab[:, mo:mo + n], slab[:, vo:vo + n])
    return outputs


# ---------------------------------------------------------------------------
# Parameter construction (mimics torch.nn.Linear default init) + packing
# ---------------------------------------------------------------------------
def init_linear(key, fan_in, fan_out):
    kw, kb = jax.random.split(key)
    bound = 1.0 / float(np.sqrt(fan_in))
    w = jax.random.uniform(kw, (fan_in, fan_out), jnp.float32, -bound, bound)
    b = jax.random.uniform(kb, (fan_out,), jnp.float32, -bound, bound)
    return w, b


def build_params(key, in_features, discrete_sizes, continuous_bounds=None):
    keys = iter(jax.random.split(key, 64))
    channel = 128
    f_pad = _round_up(max(in_features, 1), _LANE)

    w0, b0 = init_linear(next(keys), in_features, 256)
    w1, b1 = init_linear(next(keys), 256, channel)

    raw = {"w0": w0, "b0": b0, "w1": w1, "b1": b1, "discrete": [],
           "continuous": None}

    head_w1, head_b1 = [], []
    disc_w2, disc_b2, widths = [], [], []
    for n in discrete_sizes:
        wa, ba = init_linear(next(keys), channel, 128)
        wb, bb = init_linear(next(keys), 128, n)
        raw["discrete"].append((wa, ba, wb, bb))
        head_w1.append(wa); head_b1.append(ba)
        disc_w2.append(np.asarray(wb)); disc_b2.append(np.asarray(bb))
        widths.append(n)

    n_cont = 0
    cont_w2 = cont_b2 = None
    lower = rng = None
    if continuous_bounds is not None:
        lower_np, upper_np = np.asarray(continuous_bounds, np.float32).T.copy()
        n_cont = len(lower_np)
        wa, ba = init_linear(next(keys), channel, 128)
        wb, bb = init_linear(next(keys), 128, n_cont * 2)
        lower = jnp.asarray(lower_np)
        rng = jnp.asarray(upper_np - lower_np)
        raw["continuous"] = (wa, ba, wb, bb, lower, rng)
        head_w1.append(wa); head_b1.append(ba)
        cont_w2, cont_b2 = np.asarray(wb), np.asarray(bb)

    H = len(head_w1)
    total_disc = int(np.sum(widths)) if widths else 0
    offsets = (np.concatenate([[0], np.cumsum(widths)[:-1]]).astype(int)
               if widths else np.array([], int))

    # Slab layout: [discrete logits | pad to 128 | mean block (128-padded)
    #               | var block (128-padded)].  Lane-aligned mean/var blocks
    # let the kernel apply tanh / softplus to static, dense slices only.
    if n_cont > 0:
        cont_pad = _round_up(n_cont, _LANE)
        mean_off = _round_up(total_disc, _LANE)
        var_off = mean_off + cont_pad
        out_pad = var_off + cont_pad
    else:
        cont_pad = _LANE                      # dummy size for lower/range slabs
        mean_off = var_off = -1
        out_pad = max(_LANE, _round_up(max(total_disc, 1), _LANE))

    # pack head hidden layers column-wise -> one (128, 128*H) matmul
    if H:
        wh = jnp.concatenate(head_w1, axis=1)
        bh = jnp.concatenate(head_b1, axis=0).reshape(1, -1)
    else:
        wh = jnp.zeros((channel, 128), jnp.float32)
        bh = jnp.zeros((1, 128), jnp.float32)

    # pack head output layers block-diagonally into a lane-dense slab
    w2 = np.zeros((channel * max(H, 1), out_pad), np.float32)
    b2 = np.zeros((1, out_pad), np.float32)
    for i in range(len(widths)):
        off, wdt = int(offsets[i]), int(widths[i])
        w2[channel * i:channel * (i + 1), off:off + wdt] = disc_w2[i]
        b2[0, off:off + wdt] = disc_b2[i]
    if n_cont > 0:
        # PyTorch order is interleaved (m0,v0,m1,v1,...) via Unflatten+unbind;
        # de-interleave so mean columns land in the mean block, var columns in
        # the var block.
        i = H - 1
        w2[channel * i:channel * (i + 1), mean_off:mean_off + n_cont] = cont_w2[:, 0::2]
        w2[channel * i:channel * (i + 1), var_off:var_off + n_cont] = cont_w2[:, 1::2]
        b2[0, mean_off:mean_off + n_cont] = cont_b2[0::2]
        b2[0, var_off:var_off + n_cont] = cont_b2[1::2]

    lower_slab = np.zeros((1, cont_pad), np.float32)
    range_slab = np.zeros((1, cont_pad), np.float32)
    if n_cont > 0:
        lower_slab[0, :n_cont] = np.asarray(lower)
        range_slab[0, :n_cont] = np.asarray(rng)

    # Weights in bf16 (MXU-native); biases / lower / range stay f32.
    w0_p = jnp.pad(w0, ((0, f_pad - in_features), (0, 0)))
    arrays = dict(
        w0=w0_p.astype(jnp.bfloat16), b0=b0.reshape(1, -1),
        w1=w1.astype(jnp.bfloat16), b1=b1.reshape(1, -1),
        wh=wh.astype(jnp.bfloat16), bh=bh,
        w2=jnp.asarray(w2, jnp.bfloat16), b2=jnp.asarray(b2),
        lower=jnp.asarray(lower_slab), range=jnp.asarray(range_slab),
    )
    meta = Meta(
        f_pad=f_pad,
        num_heads=max(H, 1),
        head_offsets=tuple(int(o) for o in offsets),
        head_widths=tuple(int(w) for w in widths),
        out_pad=out_pad,
        n_discrete=len(discrete_sizes),
        n_continuous=n_cont,
        cont_mean_offset=mean_off,
        cont_var_offset=var_off,
        cont_pad=cont_pad,
    )
    return meta, arrays, raw


# ---------------------------------------------------------------------------
# Pure-JAX reference (matches the torch module exactly, incl. interleaving)
# ---------------------------------------------------------------------------
def reference_forward(raw, x):
    def dense(z, w, b, act=False):
        y = z @ w + b
        return jnp.where(y >= 0, y, _NEG_SLOPE * y) if act else y

    s = dense(x, raw["w0"], raw["b0"], True)
    s = dense(s, raw["w1"], raw["b1"], True)
    out = {"discrete": []}
    for (wa, ba, wb, bb) in raw["discrete"]:
        h = dense(s, wa, ba, True)
        out["discrete"].append(dense(h, wb, bb))
    if raw["continuous"] is not None:
        wa, ba, wb, bb, lower, rng = raw["continuous"]
        h = dense(s, wa, ba, True)
        y = dense(h, wb, bb)                       # interleaved (m0,v0,...)
        B = y.shape[0]
        n = lower.shape[0]
        y3 = y.reshape(B, n, 2)                    # Unflatten(-1, [n, 2])
        mean = jnp.tanh(y3[..., 0]) + 0.5          # unbind(-1)
        mean = lower[None, :] + mean * rng[None, :]
        var = jax.nn.softplus(y3[..., 1]) + _EPS
        out["continuous"] = (mean, var)
    return out


if __name__ == "__main__":
    key = jax.random.PRNGKey(0)
    k_param, k_x = jax.random.split(key)

    in_features = 32
    batch = 2
    discrete_sizes = [6, 4]                             # two discrete heads
    continuous_bounds = np.array([[-1.0, 1.0],
                                  [0.0, 2.0],
                                  [-2.0, 0.0]], dtype=np.float32)  # (n=3, 2)

    meta, arrays, raw = build_params(k_param, in_features, discrete_sizes,
                                     continuous_bounds)
    x = jax.random.normal(k_x, (batch, in_features), jnp.float32)

    out = forward(meta, arrays, x)
    out = jax.tree_util.tree_map(jax.block_until_ready, out)

    # shape sanity checks
    assert [o.shape for o in out["discrete"]] == [(batch, 6), (batch, 4)]
    mean, var = out["continuous"]
    assert mean.shape == (batch, 3) and var.shape == (batch, 3)
    assert bool(jnp.all(var > 0))

    # numerical check against an exact pure-JAX f32 reference of the module
    # (kernel uses bf16 MXU inputs with f32 accumulation -> relaxed tolerance)
    ref = reference_forward(raw, x)
    for got, want in zip(out["discrete"], ref["discrete"]):
        np.testing.assert_allclose(np.asarray(got), np.asarray(want),
                                   rtol=2e-2, atol=2e-2)
    np.testing.assert_allclose(np.asarray(mean), np.asarray(ref["continuous"][0]),
                               rtol=2e-2, atol=2e-2)
    np.testing.assert_allclose(np.asarray(var), np.asarray(ref["continuous"][1]),
                               rtol=2e-2, atol=2e-2)

    print("KERNEL_OK")
</pallas_src>

<mosaic_0001>
module attributes {stable_mosaic.version = 11 : i64} {
  func.func @_fused_kernel(%arg0: i32, %arg1: memref<8x128xbf16, #tpu.memory_space<vmem>>, %arg2: memref<128x256xbf16, #tpu.memory_space<vmem>>, %arg3: memref<1x256xf32, #tpu.memory_space<vmem>>, %arg4: memref<256x128xbf16, #tpu.memory_space<vmem>>, %arg5: memref<1x128xf32, #tpu.memory_space<vmem>>, %arg6: memref<128x384xbf16, #tpu.memory_space<vmem>>, %arg7: memref<1x384xf32, #tpu.memory_space<vmem>>, %arg8: memref<384x384xbf16, #tpu.memory_space<vmem>>, %arg9: memref<1x384xf32, #tpu.memory_space<vmem>>, %arg10: memref<1x128xf32, #tpu.memory_space<vmem>>, %arg11: memref<1x128xf32, #tpu.memory_space<vmem>>, %arg12: memref<8x384xf32, #tpu.memory_space<vmem>>) attributes {dimension_semantics = [#tpu.dimension_semantics<parallel>], iteration_bounds = array<i64: 1>, scalar_prefetch = 0 : i64, scratch_operands = 0 : i64, tpu.core_type = #tpu.core_type<tc>, window_params = [{transform_indices = @transform_0, window_bounds = array<i64: 8, 128>}, {pipeline_mode = #tpu.pipeline_mode<synchronous>, transform_indices = @transform_1, window_bounds = array<i64: 128, 256>}, {pipeline_mode = #tpu.pipeline_mode<synchronous>, transform_indices = @transform_2, window_bounds = array<i64: 1, 256>}, {pipeline_mode = #tpu.pipeline_mode<synchronous>, transform_indices = @transform_3, window_bounds = array<i64: 256, 128>}, {pipeline_mode = #tpu.pipeline_mode<synchronous>, transform_indices = @transform_4, window_bounds = array<i64: 1, 128>}, {pipeline_mode = #tpu.pipeline_mode<synchronous>, transform_indices = @transform_5, window_bounds = array<i64: 128, 384>}, {pipeline_mode = #tpu.pipeline_mode<synchronous>, transform_indices = @transform_6, window_bounds = array<i64: 1, 384>}, {pipeline_mode = #tpu.pipeline_mode<synchronous>, transform_indices = @transform_7, window_bounds = array<i64: 384, 384>}, {pipeline_mode = #tpu.pipeline_mode<synchronous>, transform_indices = @transform_8, window_bounds = array<i64: 1, 384>}, {pipeline_mode = #tpu.pipeline_mode<synchronous>, transform_indices = @transform_9, window_bounds = array<i64: 1, 128>}, {pipeline_mode = #tpu.pipeline_mode<synchronous>, transform_indices = @transform_10, window_bounds = array<i64: 1, 128>}, {transform_indices = @transform_11, window_bounds = array<i64: 8, 384>}]} {
    %c0 = arith.constant 0 : index
    %c0_0 = arith.constant 0 : index
    %0 = vector.load %arg1[%c0, %c0_0] : memref<8x128xbf16, #tpu.memory_space<vmem>>, vector<8x128xbf16>
    %c0_1 = arith.constant 0 : index
    %c0_2 = arith.constant 0 : index
    %1 = vector.load %arg2[%c0_1, %c0_2] : memref<128x256xbf16, #tpu.memory_space<vmem>>, vector<128x256xbf16>
    %cst = arith.constant dense<0.000000e+00> : vector<8x256xf32>
    %2 = tpu.matmul %0, %1, %cst {dimension_numbers = #tpu.dot_dimension_numbers<[1], [0], [0], [1], [0, 0, 1, 1], [], []>} : vector<8x128xbf16>, vector<128x256xbf16>, vector<8x256xf32> -> vector<8x256xf32>
    %c0_3 = arith.constant 0 : index
    %c0_4 = arith.constant 0 : index
    %3 = vector.load %arg3[%c0_3, %c0_4] : memref<1x256xf32, #tpu.memory_space<vmem>>, vector<1x256xf32>
    %4 = vector.broadcast %3 : vector<1x256xf32> to vector<8x256xf32>
    %5 = arith.addf %2, %4 : vector<8x256xf32>
    %cst_5 = arith.constant 0.000000e+00 : f32
    %6 = vector.broadcast %cst_5 : f32 to vector<8x256xf32>
    %7 = arith.cmpf oge, %5, %6 : vector<8x256xf32>
    %cst_6 = arith.constant 0.00999999977 : f32
    %8 = vector.broadcast %cst_6 : f32 to vector<8x256xf32>
    %9 = arith.mulf %8, %5 : vector<8x256xf32>
    %10 = arith.select %7, %5, %9 : vector<8x256xi1>, vector<8x256xf32>
    %11 = arith.truncf %10 : vector<8x256xf32> to vector<8x256xbf16>
    %c0_7 = arith.constant 0 : index
    %c0_8 = arith.constant 0 : index
    %12 = vector.load %arg4[%c0_7, %c0_8] : memref<256x128xbf16, #tpu.memory_space<vmem>>, vector<256x128xbf16>
    %cst_9 = arith.constant dense<0.000000e+00> : vector<8x128xf32>
    %13 = tpu.matmul %11, %12, %cst_9 {dimension_numbers = #tpu.dot_dimension_numbers<[1], [0], [0], [1], [0, 0, 1, 1], [], []>} : vector<8x256xbf16>, vector<256x128xbf16>, vector<8x128xf32> -> vector<8x128xf32>
    %c0_10 = arith.constant 0 : index
    %c0_11 = arith.constant 0 : index
    %14 = vector.load %arg5[%c0_10, %c0_11] : memref<1x128xf32, #tpu.memory_space<vmem>>, vector<1x128xf32>
    %15 = vector.broadcast %14 : vector<1x128xf32> to vector<8x128xf32>
    %16 = arith.addf %13, %15 : vector<8x128xf32>
    %cst_12 = arith.constant 0.000000e+00 : f32
    %17 = vector.broadcast %cst_12 : f32 to vector<8x128xf32>
    %18 = arith.cmpf oge, %16, %17 : vector<8x128xf32>
    %cst_13 = arith.constant 0.00999999977 : f32
    %19 = vector.broadcast %cst_13 : f32 to vector<8x128xf32>
    %20 = arith.mulf %19, %16 : vector<8x128xf32>
    %21 = arith.select %18, %16, %20 : vector<8x128xi1>, vector<8x128xf32>
    %22 = arith.truncf %21 : vector<8x128xf32> to vector<8x128xbf16>
    %c0_14 = arith.constant 0 : index
    %c0_15 = arith.constant 0 : index
    %23 = vector.load %arg6[%c0_14, %c0_15] : memref<128x384xbf16, #tpu.memory_space<vmem>>, vector<128x384xbf16>
    %cst_16 = arith.constant dense<0.000000e+00> : vector<8x384xf32>
    %24 = tpu.matmul %22, %23, %cst_16 {dimension_numbers = #tpu.dot_dimension_numbers<[1], [0], [0], [1], [0, 0, 1, 1], [], []>} : vector<8x128xbf16>, vector<128x384xbf16>, vector<8x384xf32> -> vector<8x384xf32>
    %c0_17 = arith.constant 0 : index
    %c0_18 = arith.constant 0 : index
    %25 = vector.load %arg7[%c0_17, %c0_18] : memref<1x384xf32, #tpu.memory_space<vmem>>, vector<1x384xf32>
    %26 = vector.broadcast %25 : vector<1x384xf32> to vector<8x384xf32>
    %27 = arith.addf %24, %26 : vector<8x384xf32>
    %cst_19 = arith.constant 0.000000e+00 : f32
    %28 = vector.broadcast %cst_19 : f32 to vector<8x384xf32>
    %29 = arith.cmpf oge, %27, %28 : vector<8x384xf32>
    %cst_20 = arith.constant 0.00999999977 : f32
    %30 = vector.broadcast %cst_20 : f32 to vector<8x384xf32>
    %31 = arith.mulf %30, %27 : vector<8x384xf32>
    %32 = arith.select %29, %27, %31 : vector<8x384xi1>, vector<8x384xf32>
    %33 = arith.truncf %32 : vector<8x384xf32> to vector<8x384xbf16>
    %c0_21 = arith.constant 0 : index
    %c0_22 = arith.constant 0 : index
    %34 = vector.load %arg8[%c0_21, %c0_22] : memref<384x384xbf16, #tpu.memory_space<vmem>>, vector<384x384xbf16>
    %cst_23 = arith.constant dense<0.000000e+00> : vector<8x384xf32>
    %35 = tpu.matmul %33, %34, %cst_23 {dimension_numbers = #tpu.dot_dimension_numbers<[1], [0], [0], [1], [0, 0, 1, 1], [], []>} : vector<8x384xbf16>, vector<384x384xbf16>, vector<8x384xf32> -> vector<8x384xf32>
    %c0_24 = arith.constant 0 : index
    %c0_25 = arith.constant 0 : index
    %36 = vector.load %arg9[%c0_24, %c0_25] : memref<1x384xf32, #tpu.memory_space<vmem>>, vector<1x384xf32>
    %37 = vector.broadcast %36 : vector<1x384xf32> to vector<8x384xf32>
    %38 = arith.addf %35, %37 : vector<8x384xf32>
    %39 = vector.extract_strided_slice %38 {offsets = [0, 0], sizes = [8, 128], strides = [1, 1]} : vector<8x384xf32> to vector<8x128xf32>
    %c0_26 = arith.constant 0 : index
    %c0_27 = arith.constant 0 : index
    %40 = vector.load %arg12[%c0_26, %c0_27] : memref<8x384xf32, #tpu.memory_space<vmem>>, vector<8x128xf32>
    tpu.vector_store %arg12[%c0_26, %c0_27], %39 {strides = array<i32>} : memref<8x384xf32, #tpu.memory_space<vmem>>, vector<8x128xf32>,
    %41 = vector.extract_strided_slice %38 {offsets = [0, 128], sizes = [8, 128], strides = [1, 1]} : vector<8x384xf32> to vector<8x128xf32>
    %c0_28 = arith.constant 0 : index
    %c0_29 = arith.constant 0 : index
    %42 = vector.load %arg10[%c0_28, %c0_29] : memref<1x128xf32, #tpu.memory_space<vmem>>, vector<1x128xf32>
    %43 = math.tanh %41 : vector<8x128xf32>
    %cst_30 = arith.constant 5.000000e-01 : f32
    %44 = vector.broadcast %cst_30 : f32 to vector<8x128xf32>
    %45 = arith.addf %43, %44 : vector<8x128xf32>
    %c0_31 = arith.constant 0 : index
    %c0_32 = arith.constant 0 : index
    %46 = vector.load %arg11[%c0_31, %c0_32] : memref<1x128xf32, #tpu.memory_space<vmem>>, vector<1x128xf32>
    %47 = vector.broadcast %46 : vector<1x128xf32> to vector<8x128xf32>
    %48 = arith.mulf %45, %47 : vector<8x128xf32>
    %49 = vector.broadcast %42 : vector<1x128xf32> to vector<8x128xf32>
    %50 = arith.addf %49, %48 : vector<8x128xf32>
    %c0_33 = arith.constant 0 : index
    %c128 = arith.constant 128 : index
    %51 = vector.load %arg12[%c0_33, %c128] : memref<8x384xf32, #tpu.memory_space<vmem>>, vector<8x128xf32>
    tpu.vector_store %arg12[%c0_33, %c128], %50 {strides = array<i32>} : memref<8x384xf32, #tpu.memory_space<vmem>>, vector<8x128xf32>,
    %52 = vector.extract_strided_slice %38 {offsets = [0, 256], sizes = [8, 128], strides = [1, 1]} : vector<8x384xf32> to vector<8x128xf32>
    %cst_34 = arith.constant 0.000000e+00 : f32
    %53 = vector.broadcast %cst_34 : f32 to vector<8x128xf32>
    %54 = arith.maximumf %52, %53 : vector<8x128xf32>
    %55 = math.absf %52 : vector<8x128xf32>
    %cst_35 = arith.constant 0.000000e+00 : f32
    %56 = vector.broadcast %cst_35 : f32 to vector<8x128xf32>
    %57 = arith.subf %56, %55 : vector<8x128xf32>
    %58 = math.exp %57 : vector<8x128xf32>
    %59 = math.log1p %58 : vector<8x128xf32>
    %60 = arith.addf %54, %59 : vector<8x128xf32>
    %cst_36 = arith.constant 1.1920929E-7 : f32
    %61 = vector.broadcast %cst_36 : f32 to vector<8x128xf32>
    %62 = arith.addf %60, %61 : vector<8x128xf32>
    %c0_37 = arith.constant 0 : index
    %c256 = arith.constant 256 : index
    %63 = vector.load %arg12[%c0_37, %c256] : memref<8x384xf32, #tpu.memory_space<vmem>>, vector<8x128xf32>
    tpu.vector_store %arg12[%c0_37, %c256], %62 {strides = array<i32>} : memref<8x384xf32, #tpu.memory_space<vmem>>, vector<8x128xf32>,
    return
  }
  func.func @transform_0(%arg0: i32) -> (i32, i32) {
    %c0_i32 = arith.constant 0 : i32
    %c0_i32_0 = arith.constant 0 : i32
    return %arg0, %c0_i32 : i32, i32
  }
  func.func @transform_1(%arg0: i32) -> (i32, i32) {
    %c0_i32 = arith.constant 0 : i32
    %c0_i32_0 = arith.constant 0 : i32
    %c0_i32_1 = arith.constant 0 : i32
    return %c0_i32, %c0_i32_0 : i32, i32
  }
  func.func @transform_2(%arg0: i32) -> (i32, i32) {
    %c0_i32 = arith.constant 0 : i32
    %c0_i32_0 = arith.constant 0 : i32
    %c0_i32_1 = arith.constant 0 : i32
    return %c0_i32, %c0_i32_0 : i32, i32
  }
  func.func @transform_3(%arg0: i32) -> (i32, i32) {
    %c0_i32 = arith.constant 0 : i32
    %c0_i32_0 = arith.constant 0 : i32
    %c0_i32_1 = arith.constant 0 : i32
    return %c0_i32, %c0_i32_0 : i32, i32
  }
  func.func @transform_4(%arg0: i32) -> (i32, i32) {
    %c0_i32 = arith.constant 0 : i32
    %c0_i32_0 = arith.constant 0 : i32
    %c0_i32_1 = arith.constant 0 : i32
    return %c0_i32, %c0_i32_0 : i32, i32
  }
  func.func @transform_5(%arg0: i32) -> (i32, i32) {
    %c0_i32 = arith.constant 0 : i32
    %c0_i32_0 = arith.constant 0 : i32
    %c0_i32_1 = arith.constant 0 : i32
    return %c0_i32, %c0_i32_0 : i32, i32
  }
  func.func @transform_6(%arg0: i32) -> (i32, i32) {
    %c0_i32 = arith.constant 0 : i32
    %c0_i32_0 = arith.constant 0 : i32
    %c0_i32_1 = arith.constant 0 : i32
    return %c0_i32, %c0_i32_0 : i32, i32
  }
  func.func @transform_7(%arg0: i32) -> (i32, i32) {
    %c0_i32 = arith.constant 0 : i32
    %c0_i32_0 = arith.constant 0 : i32
    %c0_i32_1 = arith.constant 0 : i32
    return %c0_i32, %c0_i32_0 : i32, i32
  }
  func.func @transform_8(%arg0: i32) -> (i32, i32) {
    %c0_i32 = arith.constant 0 : i32
    %c0_i32_0 = arith.constant 0 : i32
    %c0_i32_1 = arith.constant 0 : i32
    return %c0_i32, %c0_i32_0 : i32, i32
  }
  func.func @transform_9(%arg0: i32) -> (i32, i32) {
    %c0_i32 = arith.constant 0 : i32
    %c0_i32_0 = arith.constant 0 : i32
    %c0_i32_1 = arith.constant 0 : i32
    return %c0_i32, %c0_i32_0 : i32, i32
  }
  func.func @transform_10(%arg0: i32) -> (i32, i32) {
    %c0_i32 = arith.constant 0 : i32
    %c0_i32_0 = arith.constant 0 : i32
    %c0_i32_1 = arith.constant 0 : i32
    return %c0_i32, %c0_i32_0 : i32, i32
  }
  func.func @transform_11(%arg0: i32) -> (i32, i32) {
    %c0_i32 = arith.constant 0 : i32
    %c0_i32_0 = arith.constant 0 : i32
    return %arg0, %c0_i32 : i32, i32
  }
}

</mosaic_0001>

<llo_original>
// kernel: forward.1
$region0: #{forward.1}
  #allocation0 [shape = 'u32[]', space=smem, size = 0x4, offset = 0x4, fixed_abs, tag = 'smem constant byte address 0x4 - core index']
  #allocation1 [shape = 'u32[144,128]{1,0:T(1,128)}', space=vmem, size = 0x12000, scoped, tag = 'internal scratch']
  %s0 = inlined_call_operand.vmem [shape: bf16[8,128], index: 0, kind: input, shape index: {}]
  %s1 = inlined_call_operand.hbm [shape: bf16[128,256], index: 1, kind: input, shape index: {}]
  %s2 = inlined_call_operand.vmem [shape: f32[1,256], index: 2, kind: input, shape index: {}]
  %s3 = inlined_call_operand.hbm [shape: bf16[256,128], index: 3, kind: input, shape index: {}]
  %s4 = inlined_call_operand.vmem [shape: f32[1,128], index: 4, kind: input, shape index: {}]
  %s5 = inlined_call_operand.hbm [shape: bf16[128,384], index: 5, kind: input, shape index: {}]
  %s6 = inlined_call_operand.vmem [shape: f32[1,384], index: 6, kind: input, shape index: {}]
  %s7 = inlined_call_operand.hbm [shape: bf16[384,384], index: 7, kind: input, shape index: {}]
  %s8 = inlined_call_operand.vmem [shape: f32[1,384], index: 8, kind: input, shape index: {}]
  %s9 = inlined_call_operand.vmem [shape: f32[1,128], index: 9, kind: input, shape index: {}]
  %s10 = inlined_call_operand.vmem [shape: f32[1,128], index: 10, kind: input, shape index: {}]
  %s11 = inlined_call_operand.vmem [shape: f32[8,384], index: 11, kind: output, shape index: {}]
  %s12 = sld [smem:[#allocation0]]
  $region70: #{forward.1} parent=0
    _
  %s14 = ssub.s32 1, %s12
  %s15 = scalar_select 0, %s14, %s12
  $region1: #{forward.1} parent=0
    #allocation2 [shape = 'u8[65536]{0}', space=vmem, size = 0x10000, scoped, tag = 'input window, operand 1, single buffered']
    #allocation3 [shape = 's32[1]{0}', space=sflag, size = 0x4, scoped, tag = 'scoped memory for forward.1']
    #allocation4 [shape = 'u8[65536]{0}', space=vmem, size = 0x10000, scoped, tag = 'input window, operand 3, single buffered']
    #allocation5 [shape = 's32[1]{0}', space=sflag, size = 0x4, scoped, tag = 'scoped memory for forward.1']
    #allocation6 [shape = 'u8[98304]{0}', space=vmem, size = 0x18000, scoped, tag = 'input window, operand 5, single buffered']
    #allocation7 [shape = 'u8[294912]{0}', space=vmem, size = 0x48000, scoped, tag = 'input window, operand 7, single buffered']
    #allocation8 [shape = 's32[1]{0}', space=sflag, size = 0x4, scoped, tag = 'scoped memory for forward.1']
    %16 = vsyncpa [#allocation3], 0
    %17 = vsyncpa [#allocation5], 0
    %18 = vsyncpa [#allocation8], 0
    // Predicated region
    $region2: #{forward.1} parent=1 // pred_check
      _
    $region3: #{forward.1} parent=1 // pred_check_branch
      %20 = sbr.rel (0) target = $region5
    $region4: #{forward.1} parent=1 // pred_region
      _
    $region5: #{forward.1} parent=1 // pred_fallthru
      _
    // Predicated region
    $region6: #{forward.1} parent=1 // pred_check
      _
    $region7: #{forward.1} parent=1 // pred_check_branch
      %22 = sbr.rel (0) target = $region9
    $region8: #{forward.1} parent=1 // pred_region
      %s24 = ssub.s32 2048, 2048
      %25 = vsyncadd [#allocation3], %s24
      %s26 = sshll.u32 [#allocation2], 4
      %s27 = int_to_ptr.vmem [resolvable:$true] %s26
      %32 = dma.hbm_to_vmem [thread:$0]  %s1, 2048, %s27, [#allocation3], 128, 128, 8
    $region9: #{forward.1} parent=1 // pred_fallthru
      _
    // Predicated region
    $region10: #{forward.1} parent=1 // pred_check
      _
    $region11: #{forward.1} parent=1 // pred_check_branch
      %34 = sbr.rel (0) target = $region13
    $region12: #{forward.1} parent=1 // pred_region
      _
    $region13: #{forward.1} parent=1 // pred_fallthru
      _
    // Predicated region
    $region14: #{forward.1} parent=1 // pred_check
      _
    $region15: #{forward.1} parent=1 // pred_check_branch
      %36 = sbr.rel (0) target = $region17
    $region16: #{forward.1} parent=1 // pred_region
      %s38 = ssub.s32 2048, 2048
      %39 = vsyncadd [#allocation5], %s38
      %s40 = sshll.u32 [#allocation4], 4
      %s41 = int_to_ptr.vmem [resolvable:$true] %s40
      %46 = dma.hbm_to_vmem [thread:$0]  %s3, 2048, %s41, [#allocation5], 64, 64, 4
    $region17: #{forward.1} parent=1 // pred_fallthru
      _
    // Predicated region
    $region18: #{forward.1} parent=1 // pred_check
      _
    $region19: #{forward.1} parent=1 // pred_check_branch
      %48 = sbr.rel (0) target = $region21
    $region20: #{forward.1} parent=1 // pred_region
      _
    $region21: #{forward.1} parent=1 // pred_fallthru
      _
    // Predicated region
    $region22: #{forward.1} parent=1 // pred_check
      _
    $region23: #{forward.1} parent=1 // pred_check_branch
      %50 = sbr.rel (0) target = $region25
    $region24: #{forward.1} parent=1 // pred_region
      %s52 = ssub.s32 3072, 3072
      %53 = vsyncadd [#allocation5], %s52
      %s54 = sshll.u32 [#allocation6], 4
      %s55 = int_to_ptr.vmem [resolvable:$true] %s54
      %60 = dma.hbm_to_vmem [thread:$0]  %s5, 3072, %s55, [#allocation5], 192, 192, 12
    $region25: #{forward.1} parent=1 // pred_fallthru
      _
    // Predicated region
    $region26: #{forward.1} parent=1 // pred_check
      _
    $region27: #{forward.1} parent=1 // pred_check_branch
      %62 = sbr.rel (0) target = $region29
    $region28: #{forward.1} parent=1 // pred_region
      _
    $region29: #{forward.1} parent=1 // pred_fallthru
      _
    // Predicated region
    $region30: #{forward.1} parent=1 // pred_check
      _
    $region31: #{forward.1} parent=1 // pred_check_branch
      %64 = sbr.rel (0) target = $region33
    $region32: #{forward.1} parent=1 // pred_region
      %s66 = ssub.s32 9216, 9216
      %67 = vsyncadd [#allocation8], %s66
      %s68 = sshll.u32 [#allocation7], 4
      %s69 = int_to_ptr.vmem [resolvable:$true] %s68
      %74 = dma.hbm_to_vmem [thread:$0]  %s7, 9216, %s69, [#allocation8], 192, 192, 12
    $region33: #{forward.1} parent=1 // pred_fallthru
      _
    // Predicated region
    $region34: #{forward.1} parent=1 // pred_check
      _
    $region35: #{forward.1} parent=1 // pred_check_branch
      %76 = sbr.rel (0) target = $region37
    $region36: #{forward.1} parent=1 // pred_region
      _
    $region37: #{forward.1} parent=1 // pred_fallthru
      _
    // Predicated region
    $region38: #{forward.1} parent=1 // pred_check
      _
    $region39: #{forward.1} parent=1 // pred_check_branch
      %78 = sbr.rel (0) target = $region41
    $region40: #{forward.1} parent=1 // pred_region
      _
    $region41: #{forward.1} parent=1 // pred_fallthru
      _
    // Predicated region
    $region42: #{forward.1} parent=1 // pred_check
      _
    $region43: #{forward.1} parent=1 // pred_check_branch
      %80 = sbr.rel (0) target = $region45
    $region44: #{forward.1} parent=1 // pred_region
      _
    $region45: #{forward.1} parent=1 // pred_fallthru
      _
    // Predicated region
    $region46: #{forward.1} parent=1 // pred_check
      _
    $region47: #{forward.1} parent=1 // pred_check_branch
      %82 = sbr.rel (0) target = $region49
    $region48: #{forward.1} parent=1 // pred_region
      %83 = dma.done [#allocation3], 2048
    $region49: #{forward.1} parent=1 // pred_fallthru
      _
    // Predicated region
    $region50: #{forward.1} parent=1 // pred_check
      _
    $region51: #{forward.1} parent=1 // pred_check_branch
      %85 = sbr.rel (0) target = $region53
    $region52: #{forward.1} parent=1 // pred_region
      %86 = dma.done [#allocation5], 2048
    $region53: #{forward.1} parent=1 // pred_fallthru
      _
    // Predicated region
    $region54: #{forward.1} parent=1 // pred_check
      _
    $region55: #{forward.1} parent=1 // pred_check_branch
      %88 = sbr.rel (0) target = $region57
    $region56: #{forward.1} parent=1 // pred_region
      %89 = dma.done [#allocation5], 3072
    $region57: #{forward.1} parent=1 // pred_fallthru
      _
    // Predicated region
    $region58: #{forward.1} parent=1 // pred_check
      _
    $region59: #{forward.1} parent=1 // pred_check_branch
      %91 = sbr.rel (0) target = $region61
    $region60: #{forward.1} parent=1 // pred_region
      %92 = dma.done [#allocation8], 9216
    $region61: #{forward.1} parent=1 // pred_fallthru
      _
    %v94 = vld [vmem:[%s0] sm:$0xf]
    %v95 = vld [vmem:[#allocation2] sm:$0xff]
    %v96 = vld [vmem:[#allocation2 + $0x8] sm:$0xff]
    %v97 = vld [vmem:[#allocation2 + $0x10] sm:$0xff]
    %v98 = vld [vmem:[#allocation2 + $0x18] sm:$0xff]
    %v99 = vld [vmem:[#allocation2 + $0x20] sm:$0xff]
    %v100 = vld [vmem:[#allocation2 + $0x28] sm:$0xff]
    %v101 = vld [vmem:[#allocation2 + $0x30] sm:$0xff]
    %v102 = vld [vmem:[#allocation2 + $0x38] sm:$0xff]
    %v103 = vld [vmem:[#allocation2 + $0x40] sm:$0xff]
    %v104 = vld [vmem:[#allocation2 + $0x48] sm:$0xff]
    %v105 = vld [vmem:[#allocation2 + $0x50] sm:$0xff]
    %v106 = vld [vmem:[#allocation2 + $0x58] sm:$0xff]
    %v107 = vld [vmem:[#allocation2 + $0x60] sm:$0xff]
    %v108 = vld [vmem:[#allocation2 + $0x68] sm:$0xff]
    %v109 = vld [vmem:[#allocation2 + $0x70] sm:$0xff]
    %v110 = vld [vmem:[#allocation2 + $0x78] sm:$0xff]
    %v111 = vld [vmem:[%s2] sm:$0x3]
    %v113 = vlaneseq
    %v114 = vshrl.u32 %v113, 7
    %v115 = vsub.s32 0, %v114
    %v116 = vrot.slane %v111, %v115
    %v117 = vlaneseq
    %v118 = vshrl.u32 %v117, 7
    %v119 = vsub.s32 1, %v118
    %v120 = vrot.slane %v111, %v119
    %v139 = vunpack.c.l.b16 %v95
    %v140 = vunpack.c.h.b16 %v95
    %v141 = vunpack.c.l.b16 %v96
    %v142 = vunpack.c.h.b16 %v96
    %v143 = vunpack.c.l.b16 %v97
    %v144 = vunpack.c.h.b16 %v97
    %v145 = vunpack.c.l.b16 %v98
    %v146 = vunpack.c.h.b16 %v98
    %v147 = vunpack.c.l.b16 %v99
    %v148 = vunpack.c.h.b16 %v99
    %v149 = vunpack.c.l.b16 %v100
    %v150 = vunpack.c.h.b16 %v100
    %v151 = vunpack.c.l.b16 %v101
    %v152 = vunpack.c.h.b16 %v101
    %v153 = vunpack.c.l.b16 %v102
    %v154 = vunpack.c.h.b16 %v102
    %v155 = vunpack.c.l.b16 %v103
    %v156 = vunpack.c.h.b16 %v103
    %v157 = vunpack.c.l.b16 %v104
    %v158 = vunpack.c.h.b16 %v104
    %v159 = vunpack.c.l.b16 %v105
    %v160 = vunpack.c.h.b16 %v105
    %v161 = vunpack.c.l.b16 %v106
    %v162 = vunpack.c.h.b16 %v106
    %v163 = vunpack.c.l.b16 %v107
    %v164 = vunpack.c.h.b16 %v107
    %v165 = vunpack.c.l.b16 %v108
    %v166 = vunpack.c.h.b16 %v108
    %v167 = vunpack.c.l.b16 %v109
    %v168 = vunpack.c.h.b16 %v109
    %v169 = vunpack.c.l.b16 %v110
    %v170 = vunpack.c.h.b16 %v110
    %v171 = vpack.c.b16 %v141, %v139
    %v172 = vpack.c.b16 %v142, %v140
    %v173 = vpack.c.b16 %v145, %v143
    %v174 = vpack.c.b16 %v146, %v144
    %v175 = vpack.c.b16 %v149, %v147
    %v176 = vpack.c.b16 %v150, %v148
    %v177 = vpack.c.b16 %v153, %v151
    %v178 = vpack.c.b16 %v154, %v152
    %v179 = vpack.c.b16 %v157, %v155
    %v180 = vpack.c.b16 %v158, %v156
    %v181 = vpack.c.b16 %v161, %v159
    %v182 = vpack.c.b16 %v162, %v160
    %v183 = vpack.c.b16 %v165, %v163
    %v184 = vpack.c.b16 %v166, %v164
    %v185 = vpack.c.b16 %v169, %v167
    %v186 = vpack.c.b16 %v170, %v168
    %203 = vmatprep.subr.bf16.mxu0 %v172
    %204 = vmatpush1.bf16.msra.mxu0 %v171
    %205 = vmatprep.subr.bf16.mxu0 %v174
    %206 = vmatpush1.bf16.msra.mxu0 %v173
    %207 = vmatprep.subr.bf16.mxu0 %v176
    %208 = vmatpush1.bf16.msra.mxu0 %v175
    %209 = vmatprep.subr.bf16.mxu0 %v178
    %210 = vmatpush1.bf16.msra.mxu0 %v177
    %211 = vmatprep.subr.bf16.mxu0 %v180
    %212 = vmatpush1.bf16.msra.mxu0 %v179
    %213 = vmatprep.subr.bf16.mxu0 %v182
    %214 = vmatpush1.bf16.msra.mxu0 %v181
    %215 = vmatprep.subr.bf16.mxu0 %v184
    %216 = vmatpush1.bf16.msra.mxu0 %v183
    %217 = vmatprep.subr.bf16.mxu0 %v186
    %218 = vmatpush1.bf16.msra.mxu0 %v185
    %219 = vmatprep.subr.bf16.mxu0 0
    %220 = vmatpush1.bf16.msra.mxu0 0
    %221 = vmatprep.subr.bf16.mxu0 0
    %222 = vmatpush1.bf16.msra.mxu0 0
    %223 = vmatprep.subr.bf16.mxu0 0
    %224 = vmatpush1.bf16.msra.mxu0 0
    %225 = vmatprep.subr.bf16.mxu0 0
    %226 = vmatpush1.bf16.msra.mxu0 0
    %227 = vmatprep.subr.bf16.mxu0 0
    %228 = vmatpush1.bf16.msra.mxu0 0
    %229 = vmatprep.subr.bf16.mxu0 0
    %230 = vmatpush1.bf16.msra.mxu0 0
    %231 = vmatprep.subr.bf16.mxu0 0
    %232 = vmatpush1.bf16.msra.mxu0 0
    %233 = vmatprep.subr.bf16.mxu0 0
    %234 = vmatpush1.bf16.msra.mxu0 0
    %235 = vmatprep.mubr.bf16.mxu0 0
    %236 = vmatmul.mubr.bf16.gmra.mrb[0].mxu0 %v94
    %v237 = vpop.f32.mrb[0].mxu0
    %v238 = vadd.f32 %v116, %v237
    %v239 = vpop.f32.mrb[0].mxu0
    %v240 = vadd.f32 %v120, %v239
    %v241 = vpop.f32.mrb[0].mxu0
    %v242 = vpop.f32.mrb[0].mxu0
    %243 = vdwg.mxu0
    %vm244 = vcmp.ge.f32.partialorder %v238, 0.0
    %vm245 = vcmp.ge.f32.partialorder %v240, 0.0
    %v246 = vmul.f32 %v238, 0.01
    %v247 = vmul.f32 %v240, 0.01
    %v248 = vsel %vm244, %v238, %v246
    %v249 = vsel %vm245, %v240, %v247
    %v250 = vpack.c.bf16 %v248, %v248
    %v251 = vpack.c.bf16 %v249, %v249
    %v252 = vld [vmem:[#allocation4] sm:$0xf]
    %v253 = vld [vmem:[#allocation4 + $0x4] sm:$0xf]
    %v254 = vld [vmem:[#allocation4 + $0x8] sm:$0xf]
    %v255 = vld [vmem:[#allocation4 + $0xc] sm:$0xf]
    %v256 = vld [vmem:[#allocation4 + $0x10] sm:$0xf]
    %v257 = vld [vmem:[#allocation4 + $0x14] sm:$0xf]
    %v258 = vld [vmem:[#allocation4 + $0x18] sm:$0xf]
    %v259 = vld [vmem:[#allocation4 + $0x1c] sm:$0xf]
    %v260 = vld [vmem:[#allocation4 + $0x20] sm:$0xf]
    %v261 = vld [vmem:[#allocation4 + $0x24] sm:$0xf]
    %v262 = vld [vmem:[#allocation4 + $0x28] sm:$0xf]
    %v263 = vld [vmem:[#allocation4 + $0x2c] sm:$0xf]
    %v264 = vld [vmem:[#allocation4 + $0x30] sm:$0xf]
    %v265 = vld [vmem:[#allocation4 + $0x34] sm:$0xf]
    %v266 = vld [vmem:[#allocation4 + $0x38] sm:$0xf]
    %v267 = vld [vmem:[#allocation4 + $0x3c] sm:$0xf]
    %v268 = vld [vmem:[#allocation4 + $0x40] sm:$0xf]
    %v269 = vld [vmem:[#allocation4 + $0x44] sm:$0xf]
    %v270 = vld [vmem:[#allocation4 + $0x48] sm:$0xf]
    %v271 = vld [vmem:[#allocation4 + $0x4c] sm:$0xf]
    %v272 = vld [vmem:[#allocation4 + $0x50] sm:$0xf]
    %v273 = vld [vmem:[#allocation4 + $0x54] sm:$0xf]
    %v274 = vld [vmem:[#allocation4 + $0x58] sm:$0xf]
    %v275 = vld [vmem:[#allocation4 + $0x5c] sm:$0xf]
    %v276 = vld [vmem:[#allocation4 + $0x60] sm:$0xf]
    %v277 = vld [vmem:[#allocation4 + $0x64] sm:$0xf]
    %v278 = vld [vmem:[#allocation4 + $0x68] sm:$0xf]
    %v279 = vld [vmem:[#allocation4 + $0x6c] sm:$0xf]
    %v280 = vld [vmem:[#allocation4 + $0x70] sm:$0xf]
    %v281 = vld [vmem:[#allocation4 + $0x74] sm:$0xf]
    %v282 = vld [vmem:[#allocation4 + $0x78] sm:$0xf]
    %v283 = vld [vmem:[#allocation4 + $0x7c] sm:$0xf]
    %v284 = vld [vmem:[%s4] sm:$0x1]
    %v286 = vlaneseq
    %v287 = vshrl.u32 %v286, 7
    %v288 = vsub.s32 0, %v287
    %v289 = vrot.slane %v284, %v288
    %v323 = vunpack.c.l.b16 %v252
    %v324 = vunpack.c.l.b16 %v253
    %v325 = vunpack.c.l.b16 %v254
    %v326 = vunpack.c.l.b16 %v255
    %v327 = vunpack.c.l.b16 %v256
    %v328 = vunpack.c.l.b16 %v257
    %v329 = vunpack.c.l.b16 %v258
    %v330 = vunpack.c.l.b16 %v259
    %v331 = vunpack.c.l.b16 %v260
    %v332 = vunpack.c.l.b16 %v261
    %v333 = vunpack.c.l.b16 %v262
    %v334 = vunpack.c.l.b16 %v263
    %v335 = vunpack.c.l.b16 %v264
    %v336 = vunpack.c.l.b16 %v265
    %v337 = vunpack.c.l.b16 %v266
    %v338 = vunpack.c.l.b16 %v267
    %v339 = vunpack.c.l.b16 %v268
    %v340 = vunpack.c.l.b16 %v269
    %v341 = vunpack.c.l.b16 %v270
    %v342 = vunpack.c.l.b16 %v271
    %v343 = vunpack.c.l.b16 %v272
    %v344 = vunpack.c.l.b16 %v273
    %v345 = vunpack.c.l.b16 %v274
    %v346 = vunpack.c.l.b16 %v275
    %v347 = vunpack.c.l.b16 %v276
    %v348 = vunpack.c.l.b16 %v277
    %v349 = vunpack.c.l.b16 %v278
    %v350 = vunpack.c.l.b16 %v279
    %v351 = vunpack.c.l.b16 %v280
    %v352 = vunpack.c.l.b16 %v281
    %v353 = vunpack.c.l.b16 %v282
    %v354 = vunpack.c.l.b16 %v283
    %v355 = vpack.c.b16 %v324, %v323
    %v356 = vpack.c.b16 %v326, %v325
    %v357 = vpack.c.b16 %v328, %v327
    %v358 = vpack.c.b16 %v330, %v329
    %v359 = vpack.c.b16 %v332, %v331
    %v360 = vpack.c.b16 %v334, %v333
    %v361 = vpack.c.b16 %v336, %v335
    %v362 = vpack.c.b16 %v338, %v337
    %v363 = vpack.c.b16 %v340, %v339
    %v364 = vpack.c.b16 %v342, %v341
    %v365 = vpack.c.b16 %v344, %v343
    %v366 = vpack.c.b16 %v346, %v345
    %v367 = vpack.c.b16 %v348, %v347
    %v368 = vpack.c.b16 %v350, %v349
    %v369 = vpack.c.b16 %v352, %v351
    %v370 = vpack.c.b16 %v354, %v353
    %387 = vmatprep.subr.bf16.mxu0 0
    %388 = vmatpush1.bf16.msra.mxu0 %v355
    %389 = vmatprep.subr.bf16.mxu0 0
    %390 = vmatpush1.bf16.msra.mxu0 %v356
    %391 = vmatprep.subr.bf16.mxu0 0
    %392 = vmatpush1.bf16.msra.mxu0 %v357
    %393 = vmatprep.subr.bf16.mxu0 0
    %394 = vmatpush1.bf16.msra.mxu0 %v358
    %395 = vmatprep.subr.bf16.mxu0 0
    %396 = vmatpush1.bf16.msra.mxu0 %v359
    %397 = vmatprep.subr.bf16.mxu0 0
    %398 = vmatpush1.bf16.msra.mxu0 %v360
    %399 = vmatprep.subr.bf16.mxu0 0
    %400 = vmatpush1.bf16.msra.mxu0 %v361
    %401 = vmatprep.subr.bf16.mxu0 0
    %402 = vmatpush1.bf16.msra.mxu0 %v362
    %403 = vmatprep.subr.bf16.mxu0 0
    %404 = vmatpush1.bf16.msra.mxu0 %v363
    %405 = vmatprep.subr.bf16.mxu0 0
    %406 = vmatpush1.bf16.msra.mxu0 %v364
    %407 = vmatprep.subr.bf16.mxu0 0
    %408 = vmatpush1.bf16.msra.mxu0 %v365
    %409 = vmatprep.subr.bf16.mxu0 0
    %410 = vmatpush1.bf16.msra.mxu0 %v366
    %411 = vmatprep.subr.bf16.mxu0 0
    %412 = vmatpush1.bf16.msra.mxu0 %v367
    %413 = vmatprep.subr.bf16.mxu0 0
    %414 = vmatpush1.bf16.msra.mxu0 %v368
    %415 = vmatprep.subr.bf16.mxu0 0
    %416 = vmatpush1.bf16.msra.mxu0 %v369
    %417 = vmatprep.subr.bf16.mxu0 0
    %418 = vmatpush1.bf16.msra.mxu0 %v370
    %419 = vmatprep.mubr.bf16.mxu0 %v251
    %420 = vmatmul.mubr.bf16.gmra.mrb[0].mxu0 %v250
    %v421 = vpop.f32.mrb[0].mxu0
    %v422 = vadd.f32 %v289, %v421
    %v423 = vpop.f32.mrb[0].mxu0
    %v424 = vpop.f32.mrb[0].mxu0
    %v425 = vpop.f32.mrb[0].mxu0
    %426 = vdwg.mxu0
    %vm427 = vcmp.ge.f32.partialorder %v422, 0.0
    %v428 = vmul.f32 %v422, 0.01
    %v429 = vsel %vm427, %v422, %v428
    %v430 = vpack.c.bf16 %v429, %v429
    %v431 = vld [vmem:[#allocation6] sm:$0xff]
    %v432 = vld [vmem:[#allocation6 + $0x8] sm:$0xf]
    %v433 = vld [vmem:[#allocation6 + $0xc] sm:$0xff]
    %v434 = vld [vmem:[#allocation6 + $0x14] sm:$0xf]
    %v435 = vld [vmem:[#allocation6 + $0x18] sm:$0xff]
    %v436 = vld [vmem:[#allocation6 + $0x20] sm:$0xf]
    %v437 = vld [vmem:[#allocation6 + $0x24] sm:$0xff]
    %v438 = vld [vmem:[#allocation6 + $0x2c] sm:$0xf]
    %v439 = vld [vmem:[#allocation6 + $0x30] sm:$0xff]
    %v440 = vld [vmem:[#allocation6 + $0x38] sm:$0xf]
    %v441 = vld [vmem:[#allocation6 + $0x3c] sm:$0xff]
    %v442 = vld [vmem:[#allocation6 + $0x44] sm:$0xf]
    %v443 = vld [vmem:[#allocation6 + $0x48] sm:$0xff]
    %v444 = vld [vmem:[#allocation6 + $0x50] sm:$0xf]
    %v445 = vld [vmem:[#allocation6 + $0x54] sm:$0xff]
    %v446 = vld [vmem:[#allocation6 + $0x5c] sm:$0xf]
    %v447 = vld [vmem:[#allocation6 + $0x60] sm:$0xff]
    %v448 = vld [vmem:[#allocation6 + $0x68] sm:$0xf]
    %v449 = vld [vmem:[#allocation6 + $0x6c] sm:$0xff]
    %v450 = vld [vmem:[#allocation6 + $0x74] sm:$0xf]
    %v451 = vld [vmem:[#allocation6 + $0x78] sm:$0xff]
    %v452 = vld [vmem:[#allocation6 + $0x80] sm:$0xf]
    %v453 = vld [vmem:[#allocation6 + $0x84] sm:$0xff]
    %v454 = vld [vmem:[#allocation6 + $0x8c] sm:$0xf]
    %v455 = vld [vmem:[#allocation6 + $0x90] sm:$0xff]
    %v456 = vld [vmem:[#allocation6 + $0x98] sm:$0xf]
    %v457 = vld [vmem:[#allocation6 + $0x9c] sm:$0xff]
    %v458 = vld [vmem:[#allocation6 + $0xa4] sm:$0xf]
    %v459 = vld [vmem:[#allocation6 + $0xa8] sm:$0xff]
    %v460 = vld [vmem:[#allocation6 + $0xb0] sm:$0xf]
    %v461 = vld [vmem:[#allocation6 + $0xb4] sm:$0xff]
    %v462 = vld [vmem:[#allocation6 + $0xbc] sm:$0xf]
    %v463 = vld [vmem:[%s6] sm:$0x7]
    %v465 = vlaneseq
    %v466 = vshrl.u32 %v465, 7
    %v467 = vsub.s32 0, %v466
    %v468 = vrot.slane %v463, %v467
    %v469 = vlaneseq
    %v470 = vshrl.u32 %v469, 7
    %v471 = vsub.s32 1, %v470
    %v472 = vrot.slane %v463, %v471
    %v473 = vlaneseq
    %v474 = vshrl.u32 %v473, 7
    %v475 = vsub.s32 2, %v474
    %v476 = vrot.slane %v463, %v475
    %v512 = vunpack.c.l.b16 %v431
    %v513 = vunpack.c.h.b16 %v431
    %v514 = vunpack.c.l.b16 %v432
    %v515 = vunpack.c.l.b16 %v433
    %v516 = vunpack.c.h.b16 %v433
    %v517 = vunpack.c.l.b16 %v434
    %v518 = vunpack.c.l.b16 %v435
    %v519 = vunpack.c.h.b16 %v435
    %v520 = vunpack.c.l.b16 %v436
    %v521 = vunpack.c.l.b16 %v437
    %v522 = vunpack.c.h.b16 %v437
    %v523 = vunpack.c.l.b16 %v438
    %v524 = vunpack.c.l.b16 %v439
    %v525 = vunpack.c.h.b16 %v439
    %v526 = vunpack.c.l.b16 %v440
    %v527 = vunpack.c.l.b16 %v441
    %v528 = vunpack.c.h.b16 %v441
    %v529 = vunpack.c.l.b16 %v442
    %v530 = vunpack.c.l.b16 %v443
    %v531 = vunpack.c.h.b16 %v443
    %v532 = vunpack.c.l.b16 %v444
    %v533 = vunpack.c.l.b16 %v445
    %v534 = vunpack.c.h.b16 %v445
    %v535 = vunpack.c.l.b16 %v446
    %v536 = vunpack.c.l.b16 %v447
    %v537 = vunpack.c.h.b16 %v447
    %v538 = vunpack.c.l.b16 %v448
    %v539 = vunpack.c.l.b16 %v449
    %v540 = vunpack.c.h.b16 %v449
    %v541 = vunpack.c.l.b16 %v450
    %v542 = vunpack.c.l.b16 %v451
    %v543 = vunpack.c.h.b16 %v451
    %v544 = vunpack.c.l.b16 %v452
    %v545 = vunpack.c.l.b16 %v453
    %v546 = vunpack.c.h.b16 %v453
    %v547 = vunpack.c.l.b16 %v454
    %v548 = vunpack.c.l.b16 %v455
    %v549 = vunpack.c.h.b16 %v455
    %v550 = vunpack.c.l.b16 %v456
    %v551 = vunpack.c.l.b16 %v457
    %v552 = vunpack.c.h.b16 %v457
    %v553 = vunpack.c.l.b16 %v458
    %v554 = vunpack.c.l.b16 %v459
    %v555 = vunpack.c.h.b16 %v459
    %v556 = vunpack.c.l.b16 %v460
    %v557 = vunpack.c.l.b16 %v461
    %v558 = vunpack.c.h.b16 %v461
    %v559 = vunpack.c.l.b16 %v462
    %v560 = vpack.c.b16 %v515, %v512
    %v561 = vpack.c.b16 %v516, %v513
    %v562 = vpack.c.b16 %v517, %v514
    %v563 = vpack.c.b16 %v521, %v518
    %v564 = vpack.c.b16 %v522, %v519
    %v565 = vpack.c.b16 %v523, %v520
    %v566 = vpack.c.b16 %v527, %v524
    %v567 = vpack.c.b16 %v528, %v525
    %v568 = vpack.c.b16 %v529, %v526
    %v569 = vpack.c.b16 %v533, %v530
    %v570 = vpack.c.b16 %v534, %v531
    %v571 = vpack.c.b16 %v535, %v532
    %v572 = vpack.c.b16 %v539, %v536
    %v573 = vpack.c.b16 %v540, %v537
    %v574 = vpack.c.b16 %v541, %v538
    %v575 = vpack.c.b16 %v545, %v542
    %v576 = vpack.c.b16 %v546, %v543
    %v577 = vpack.c.b16 %v547, %v544
    %v578 = vpack.c.b16 %v551, %v548
    %v579 = vpack.c.b16 %v552, %v549
    %v580 = vpack.c.b16 %v553, %v550
    %v581 = vpack.c.b16 %v557, %v554
    %v582 = vpack.c.b16 %v558, %v555
    %v583 = vpack.c.b16 %v559, %v556
    %608 = vmatprep.subr.bf16.mxu0 %v561
    %609 = vmatpush1.bf16.msra.mxu0 %v560
    %610 = vmatprep.subr.bf16.mxu0 %v564
    %611 = vmatpush1.bf16.msra.mxu0 %v563
    %612 = vmatprep.subr.bf16.mxu0 %v567
    %613 = vmatpush1.bf16.msra.mxu0 %v566
    %614 = vmatprep.subr.bf16.mxu0 %v570
    %615 = vmatpush1.bf16.msra.mxu0 %v569
    %616 = vmatprep.subr.bf16.mxu0 %v573
    %617 = vmatpush1.bf16.msra.mxu0 %v572
    %618 = vmatprep.subr.bf16.mxu0 %v576
    %619 = vmatpush1.bf16.msra.mxu0 %v575
    %620 = vmatprep.subr.bf16.mxu0 %v579
    %621 = vmatpush1.bf16.msra.mxu0 %v578
    %622 = vmatprep.subr.bf16.mxu0 %v582
    %623 = vmatpush1.bf16.msra.mxu0 %v581
    %624 = vmatprep.subr.bf16.mxu0 0
    %625 = vmatpush1.bf16.msra.mxu0 0
    %626 = vmatprep.subr.bf16.mxu0 0
    %627 = vmatpush1.bf16.msra.mxu0 0
    %628 = vmatprep.subr.bf16.mxu0 0
    %629 = vmatpush1.bf16.msra.mxu0 0
    %630 = vmatprep.subr.bf16.mxu0 0
    %631 = vmatpush1.bf16.msra.mxu0 0
    %632 = vmatprep.subr.bf16.mxu0 0
    %633 = vmatpush1.bf16.msra.mxu0 0
    %634 = vmatprep.subr.bf16.mxu0 0
    %635 = vmatpush1.bf16.msra.mxu0 0
    %636 = vmatprep.subr.bf16.mxu0 0
    %637 = vmatpush1.bf16.msra.mxu0 0
    %638 = vmatprep.subr.bf16.mxu0 0
    %639 = vmatpush1.bf16.msra.mxu0 0
    %640 = vmatprep.mubr.bf16.mxu0 0
    %641 = vmatmul.mubr.bf16.gmra.mrb[0].mxu0 %v430
    %v642 = vpop.f32.mrb[0].mxu0
    %v643 = vadd.f32 %v468, %v642
    %v644 = vpop.f32.mrb[0].mxu0
    %v645 = vadd.f32 %v472, %v644
    %v646 = vpop.f32.mrb[0].mxu0
    %v647 = vpop.f32.mrb[0].mxu0
    %648 = vdwg.mxu0
    %649 = vmatprep.subr.bf16.mxu0 0
    %650 = vmatpush1.bf16.msra.mxu0 %v562
    %651 = vmatprep.subr.bf16.mxu0 0
    %652 = vmatpush1.bf16.msra.mxu0 %v565
    %653 = vmatprep.subr.bf16.mxu0 0
    %654 = vmatpush1.bf16.msra.mxu0 %v568
    %655 = vmatprep.subr.bf16.mxu0 0
    %656 = vmatpush1.bf16.msra.mxu0 %v571
    %657 = vmatprep.subr.bf16.mxu0 0
    %658 = vmatpush1.bf16.msra.mxu0 %v574
    %659 = vmatprep.subr.bf16.mxu0 0
    %660 = vmatpush1.bf16.msra.mxu0 %v577
    %661 = vmatprep.subr.bf16.mxu0 0
    %662 = vmatpush1.bf16.msra.mxu0 %v580
    %663 = vmatprep.subr.bf16.mxu0 0
    %664 = vmatpush1.bf16.msra.mxu0 %v583
    %665 = vmatprep.subr.bf16.mxu0 0
    %666 = vmatpush1.bf16.msra.mxu0 0
    %667 = vmatprep.subr.bf16.mxu0 0
    %668 = vmatpush1.bf16.msra.mxu0 0
    %669 = vmatprep.subr.bf16.mxu0 0
    %670 = vmatpush1.bf16.msra.mxu0 0
    %671 = vmatprep.subr.bf16.mxu0 0
    %672 = vmatpush1.bf16.msra.mxu0 0
    %673 = vmatprep.subr.bf16.mxu0 0
    %674 = vmatpush1.bf16.msra.mxu0 0
    %675 = vmatprep.subr.bf16.mxu0 0
    %676 = vmatpush1.bf16.msra.mxu0 0
    %677 = vmatprep.subr.bf16.mxu0 0
    %678 = vmatpush1.bf16.msra.mxu0 0
    %679 = vmatprep.subr.bf16.mxu0 0
    %680 = vmatpush1.bf16.msra.mxu0 0
    %681 = vmatprep.mubr.bf16.mxu0 0
    %682 = vmatmul.mubr.bf16.gmra.mrb[0].mxu0 %v430
    %v683 = vpop.f32.mrb[0].mxu0
    %v684 = vadd.f32 %v476, %v683
    %v685 = vpop.f32.mrb[0].mxu0
    %v686 = vpop.f32.mrb[0].mxu0
    %v687 = vpop.f32.mrb[0].mxu0
    %688 = vdwg.mxu0
    %vm689 = vcmp.ge.f32.partialorder %v643, 0.0
    %vm690 = vcmp.ge.f32.partialorder %v645, 0.0
    %vm691 = vcmp.ge.f32.partialorder %v684, 0.0
    %v692 = vmul.f32 %v643, 0.01
    %v693 = vmul.f32 %v645, 0.01
    %v694 = vmul.f32 %v684, 0.01
    %v695 = vsel %vm689, %v643, %v692
    %v696 = vsel %vm690, %v645, %v693
    %v697 = vsel %vm691, %v684, %v694
    %v698 = vpack.c.bf16 %v695, %v695
    %v699 = vpack.c.bf16 %v696, %v696
    %v700 = vpack.c.bf16 %v697, %v697
    %v701 = vld [vmem:[#allocation7] sm:$0xff]
    %v702 = vld [vmem:[#allocation7 + $0x8] sm:$0xf]
    %v703 = vld [vmem:[#allocation7 + $0xc] sm:$0xff]
    %v704 = vld [vmem:[#allocation7 + $0x14] sm:$0xf]
    %v705 = vld [vmem:[#allocation7 + $0x18] sm:$0xff]
    %v706 = vld [vmem:[#allocation7 + $0x20] sm:$0xf]
    %v707 = vld [vmem:[#allocation7 + $0x24] sm:$0xff]
    %v708 = vld [vmem:[#allocation7 + $0x2c] sm:$0xf]
    %v709 = vld [vmem:[#allocation7 + $0x30] sm:$0xff]
    %v710 = vld [vmem:[#allocation7 + $0x38] sm:$0xf]
    %v711 = vld [vmem:[#allocation7 + $0x3c] sm:$0xff]
    %v712 = vld [vmem:[#allocation7 + $0x44] sm:$0xf]
    %v713 = vld [vmem:[#allocation7 + $0x48] sm:$0xff]
    %v714 = vld [vmem:[#allocation7 + $0x50] sm:$0xf]
    %v715 = vld [vmem:[#allocation7 + $0x54] sm:$0xff]
    %v716 = vld [vmem:[#allocation7 + $0x5c] sm:$0xf]
    %v717 = vld [vmem:[#allocation7 + $0x60] sm:$0xff]
    %v718 = vld [vmem:[#allocation7 + $0x68] sm:$0xf]
    %v719 = vld [vmem:[#allocation7 + $0x6c] sm:$0xff]
    %v720 = vld [vmem:[#allocation7 + $0x74] sm:$0xf]
    %v721 = vld [vmem:[#allocation7 + $0x78] sm:$0xff]
    %v722 = vld [vmem:[#allocation7 + $0x80] sm:$0xf]
    %v723 = vld [vmem:[#allocation7 + $0x84] sm:$0xff]
    %v724 = vld [vmem:[#allocation7 + $0x8c] sm:$0xf]
    %v725 = vld [vmem:[#allocation7 + $0x90] sm:$0xff]
    %v726 = vld [vmem:[#allocation7 + $0x98] sm:$0xf]
    %v727 = vld [vmem:[#allocation7 + $0x9c] sm:$0xff]
    %v728 = vld [vmem:[#allocation7 + $0xa4] sm:$0xf]
    %v729 = vld [vmem:[#allocation7 + $0xa8] sm:$0xff]
    %v730 = vld [vmem:[#allocation7 + $0xb0] sm:$0xf]
    %v731 = vld [vmem:[#allocation7 + $0xb4] sm:$0xff]
    %v732 = vld [vmem:[#allocation7 + $0xbc] sm:$0xf]
    %v733 = vld [vmem:[#allocation7 + $0xc0] sm:$0xff]
    %v734 = vld [vmem:[#allocation7 + $0xc8] sm:$0xf]
    %v735 = vld [vmem:[#allocation7 + $0xcc] sm:$0xff]
    %v736 = vld [vmem:[#allocation7 + $0xd4] sm:$0xf]
    %v737 = vld [vmem:[#allocation7 + $0xd8] sm:$0xff]
    %v738 = vld [vmem:[#allocation7 + $0xe0] sm:$0xf]
    %v739 = vld [vmem:[#allocation7 + $0xe4] sm:$0xff]
    %v740 = vld [vmem:[#allocation7 + $0xec] sm:$0xf]
    %v741 = vld [vmem:[#allocation7 + $0xf0] sm:$0xff]
    %v742 = vld [vmem:[#allocation7 + $0xf8] sm:$0xf]
    %v743 = vld [vmem:[#allocation7 + $0xfc] sm:$0xff]
    %v744 = vld [vmem:[#allocation7 + $0x104] sm:$0xf]
    %v745 = vld [vmem:[#allocation7 + $0x108] sm:$0xff]
    %v746 = vld [vmem:[#allocation7 + $0x110] sm:$0xf]
    %v747 = vld [vmem:[#allocation7 + $0x114] sm:$0xff]
    %v748 = vld [vmem:[#allocation7 + $0x11c] sm:$0xf]
    %v749 = vld [vmem:[#allocation7 + $0x120] sm:$0xff]
    %v750 = vld [vmem:[#allocation7 + $0x128] sm:$0xf]
    %v751 = vld [vmem:[#allocation7 + $0x12c] sm:$0xff]
    %v752 = vld [vmem:[#allocation7 + $0x134] sm:$0xf]
    %v753 = vld [vmem:[#allocation7 + $0x138] sm:$0xff]
    %v754 = vld [vmem:[#allocation7 + $0x140] sm:$0xf]
    %v755 = vld [vmem:[#allocation7 + $0x144] sm:$0xff]
    %v756 = vld [vmem:[#allocation7 + $0x14c] sm:$0xf]
    %v757 = vld [vmem:[#allocation7 + $0x150] sm:$0xff]
    %v758 = vld [vmem:[#allocation7 + $0x158] sm:$0xf]
    %v759 = vld [vmem:[#allocation7 + $0x15c] sm:$0xff]
    %v760 = vld [vmem:[#allocation7 + $0x164] sm:$0xf]
    %v761 = vld [vmem:[#allocation7 + $0x168] sm:$0xff]
    %v762 = vld [vmem:[#allocation7 + $0x170] sm:$0xf]
    %v763 = vld [vmem:[#allocation7 + $0x174] sm:$0xff]
    %v764 = vld [vmem:[#allocation7 + $0x17c] sm:$0xf]
    %v765 = vld [vmem:[#allocation7 + $0x180] sm:$0xff]
    %v766 = vld [vmem:[#allocation7 + $0x188] sm:$0xf]
    %v767 = vld [vmem:[#allocation7 + $0x18c] sm:$0xff]
    %v768 = vld [vmem:[#allocation7 + $0x194] sm:$0xf]
    %v769 = vld [vmem:[#allocation7 + $0x198] sm:$0xff]
    %v770 = vld [vmem:[#allocation7 + $0x1a0] sm:$0xf]
    %v771 = vld [vmem:[#allocation7 + $0x1a4] sm:$0xff]
    %v772 = vld [vmem:[#allocation7 + $0x1ac] sm:$0xf]
    %v773 = vld [vmem:[#allocation7 + $0x1b0] sm:$0xff]
    %v774 = vld [vmem:[#allocation7 + $0x1b8] sm:$0xf]
    %v775 = vld [vmem:[#allocation7 + $0x1bc] sm:$0xff]
    %v776 = vld [vmem:[#allocation7 + $0x1c4] sm:$0xf]
    %v777 = vld [vmem:[#allocation7 + $0x1c8] sm:$0xff]
    %v778 = vld [vmem:[#allocation7 + $0x1d0] sm:$0xf]
    %v779 = vld [vmem:[#allocation7 + $0x1d4] sm:$0xff]
    %v780 = vld [vmem:[#allocation7 + $0x1dc] sm:$0xf]
    %v781 = vld [vmem:[#allocation7 + $0x1e0] sm:$0xff]
    %v782 = vld [vmem:[#allocation7 + $0x1e8] sm:$0xf]
    %v783 = vld [vmem:[#allocation7 + $0x1ec] sm:$0xff]
    %v784 = vld [vmem:[#allocation7 + $0x1f4] sm:$0xf]
    %v785 = vld [vmem:[#allocation7 + $0x1f8] sm:$0xff]
    %v786 = vld [vmem:[#allocation7 + $0x200] sm:$0xf]
    %v787 = vld [vmem:[#allocation7 + $0x204] sm:$0xff]
    %v788 = vld [vmem:[#allocation7 + $0x20c] sm:$0xf]
    %v789 = vld [vmem:[#allocation7 + $0x210] sm:$0xff]
    %v790 = vld [vmem:[#allocation7 + $0x218] sm:$0xf]
    %v791 = vld [vmem:[#allocation7 + $0x21c] sm:$0xff]
    %v792 = vld [vmem:[#allocation7 + $0x224] sm:$0xf]
    %v793 = vld [vmem:[#allocation7 + $0x228] sm:$0xff]
    %v794 = vld [vmem:[#allocation7 + $0x230] sm:$0xf]
    %v795 = vld [vmem:[#allocation7 + $0x234] sm:$0xff]
    %v796 = vld [vmem:[#allocation7 + $0x23c] sm:$0xf]
    %v797 = vld [vmem:[%s8] sm:$0x7]
    %v799 = vlaneseq
    %v800 = vshrl.u32 %v799, 7
    %v801 = vsub.s32 0, %v800
    %v802 = vrot.slane %v797, %v801
    %v803 = vlaneseq
    %v804 = vshrl.u32 %v803, 7
    %v805 = vsub.s32 1, %v804
    %v806 = vrot.slane %v797, %v805
    %v807 = vlaneseq
    %v808 = vshrl.u32 %v807, 7
    %v809 = vsub.s32 2, %v808
    %v810 = vrot.slane %v797, %v809
    %v910 = vunpack.c.l.b16 %v701
    %v911 = vunpack.c.h.b16 %v701
    %v912 = vunpack.c.l.b16 %v702
    %v913 = vunpack.c.l.b16 %v703
    %v914 = vunpack.c.h.b16 %v703
    %v915 = vunpack.c.l.b16 %v704
    %v916 = vunpack.c.l.b16 %v705
    %v917 = vunpack.c.h.b16 %v705
    %v918 = vunpack.c.l.b16 %v706
    %v919 = vunpack.c.l.b16 %v707
    %v920 = vunpack.c.h.b16 %v707
    %v921 = vunpack.c.l.b16 %v708
    %v922 = vunpack.c.l.b16 %v709
    %v923 = vunpack.c.h.b16 %v709
    %v924 = vunpack.c.l.b16 %v710
    %v925 = vunpack.c.l.b16 %v711
    %v926 = vunpack.c.h.b16 %v711
    %v927 = vunpack.c.l.b16 %v712
    %v928 = vunpack.c.l.b16 %v713
    %v929 = vunpack.c.h.b16 %v713
    %v930 = vunpack.c.l.b16 %v714
    %v931 = vunpack.c.l.b16 %v715
    %v932 = vunpack.c.h.b16 %v715
    %v933 = vunpack.c.l.b16 %v716
    %v934 = vunpack.c.l.b16 %v717
    %v935 = vunpack.c.h.b16 %v717
    %v936 = vunpack.c.l.b16 %v718
    %v937 = vunpack.c.l.b16 %v719
    %v938 = vunpack.c.h.b16 %v719
    %v939 = vunpack.c.l.b16 %v720
    %v940 = vunpack.c.l.b16 %v721
    %v941 = vunpack.c.h.b16 %v721
    %v942 = vunpack.c.l.b16 %v722
    %v943 = vunpack.c.l.b16 %v723
    %v944 = vunpack.c.h.b16 %v723
    %v945 = vunpack.c.l.b16 %v724
    %v946 = vunpack.c.l.b16 %v725
    %v947 = vunpack.c.h.b16 %v725
    %v948 = vunpack.c.l.b16 %v726
    %v949 = vunpack.c.l.b16 %v727
    %v950 = vunpack.c.h.b16 %v727
    %v951 = vunpack.c.l.b16 %v728
    %v952 = vunpack.c.l.b16 %v729
    %v953 = vunpack.c.h.b16 %v729
    %v954 = vunpack.c.l.b16 %v730
    %v955 = vunpack.c.l.b16 %v731
    %v956 = vunpack.c.h.b16 %v731
    %v957 = vunpack.c.l.b16 %v732
    %v958 = vunpack.c.l.b16 %v733
    %v959 = vunpack.c.h.b16 %v733
    %v960 = vunpack.c.l.b16 %v734
    %v961 = vunpack.c.l.b16 %v735
    %v962 = vunpack.c.h.b16 %v735
    %v963 = vunpack.c.l.b16 %v736
    %v964 = vunpack.c.l.b16 %v737
    %v965 = vunpack.c.h.b16 %v737
    %v966 = vunpack.c.l.b16 %v738
    %v967 = vunpack.c.l.b16 %v739
    %v968 = vunpack.c.h.b16 %v739
    %v969 = vunpack.c.l.b16 %v740
    %v970 = vunpack.c.l.b16 %v741
    %v971 = vunpack.c.h.b16 %v741
    %v972 = vunpack.c.l.b16 %v742
    %v973 = vunpack.c.l.b16 %v743
    %v974 = vunpack.c.h.b16 %v743
    %v975 = vunpack.c.l.b16 %v744
    %v976 = vunpack.c.l.b16 %v745
    %v977 = vunpack.c.h.b16 %v745
    %v978 = vunpack.c.l.b16 %v746
    %v979 = vunpack.c.l.b16 %v747
    %v980 = vunpack.c.h.b16 %v747
    %v981 = vunpack.c.l.b16 %v748
    %v982 = vunpack.c.l.b16 %v749
    %v983 = vunpack.c.h.b16 %v749
    %v984 = vunpack.c.l.b16 %v750
    %v985 = vunpack.c.l.b16 %v751
    %v986 = vunpack.c.h.b16 %v751
    %v987 = vunpack.c.l.b16 %v752
    %v988 = vunpack.c.l.b16 %v753
    %v989 = vunpack.c.h.b16 %v753
    %v990 = vunpack.c.l.b16 %v754
    %v991 = vunpack.c.l.b16 %v755
    %v992 = vunpack.c.h.b16 %v755
    %v993 = vunpack.c.l.b16 %v756
    %v994 = vunpack.c.l.b16 %v757
    %v995 = vunpack.c.h.b16 %v757
    %v996 = vunpack.c.l.b16 %v758
    %v997 = vunpack.c.l.b16 %v759
    %v998 = vunpack.c.h.b16 %v759
    %v999 = vunpack.c.l.b16 %v760
    %v1000 = vunpack.c.l.b16 %v761
    %v1001 = vunpack.c.h.b16 %v761
    %v1002 = vunpack.c.l.b16 %v762
    %v1003 = vunpack.c.l.b16 %v763
    %v1004 = vunpack.c.h.b16 %v763
    %v1005 = vunpack.c.l.b16 %v764
    %v1006 = vunpack.c.l.b16 %v765
    %v1007 = vunpack.c.h.b16 %v765
    %v1008 = vunpack.c.l.b16 %v766
    %v1009 = vunpack.c.l.b16 %v767
    %v1010 = vunpack.c.h.b16 %v767
    %v1011 = vunpack.c.l.b16 %v768
    %v1012 = vunpack.c.l.b16 %v769
    %v1013 = vunpack.c.h.b16 %v769
    %v1014 = vunpack.c.l.b16 %v770
    %v1015 = vunpack.c.l.b16 %v771
    %v1016 = vunpack.c.h.b16 %v771
    %v1017 = vunpack.c.l.b16 %v772
    %v1018 = vunpack.c.l.b16 %v773
    %v1019 = vunpack.c.h.b16 %v773
    %v1020 = vunpack.c.l.b16 %v774
    %v1021 = vunpack.c.l.b16 %v775
    %v1022 = vunpack.c.h.b16 %v775
    %v1023 = vunpack.c.l.b16 %v776
    %v1024 = vunpack.c.l.b16 %v777
    %v1025 = vunpack.c.h.b16 %v777
    %v1026 = vunpack.c.l.b16 %v778
    %v1027 = vunpack.c.l.b16 %v779
    %v1028 = vunpack.c.h.b16 %v779
    %v1029 = vunpack.c.l.b16 %v780
    %v1030 = vunpack.c.l.b16 %v781
    %v1031 = vunpack.c.h.b16 %v781
    %v1032 = vunpack.c.l.b16 %v782
    %v1033 = vunpack.c.l.b16 %v783
    %v1034 = vunpack.c.h.b16 %v783
    %v1035 = vunpack.c.l.b16 %v784
    %v1036 = vunpack.c.l.b16 %v785
    %v1037 = vunpack.c.h.b16 %v785
    %v1038 = vunpack.c.l.b16 %v786
    %v1039 = vunpack.c.l.b16 %v787
    %v1040 = vunpack.c.h.b16 %v787
    %v1041 = vunpack.c.l.b16 %v788
    %v1042 = vunpack.c.l.b16 %v789
    %v1043 = vunpack.c.h.b16 %v789
    %v1044 = vunpack.c.l.b16 %v790
    %v1045 = vunpack.c.l.b16 %v791
    %v1046 = vunpack.c.h.b16 %v791
    %v1047 = vunpack.c.l.b16 %v792
    %v1048 = vunpack.c.l.b16 %v793
    %v1049 = vunpack.c.h.b16 %v793
    %v1050 = vunpack.c.l.b16 %v794
    %v1051 = vunpack.c.l.b16 %v795
    %v1052 = vunpack.c.h.b16 %v795
    %v1053 = vunpack.c.l.b16 %v796
    %v1054 = vpack.c.b16 %v913, %v910
    %v1055 = vpack.c.b16 %v914, %v911
    %v1056 = vpack.c.b16 %v915, %v912
    %v1057 = vpack.c.b16 %v919, %v916
    %v1058 = vpack.c.b16 %v920, %v917
    %v1059 = vpack.c.b16 %v921, %v918
    %v1060 = vpack.c.b16 %v925, %v922
    %v1061 = vpack.c.b16 %v926, %v923
    %v1062 = vpack.c.b16 %v927, %v924
    %v1063 = vpack.c.b16 %v931, %v928
    %v1064 = vpack.c.b16 %v932, %v929
    %v1065 = vpack.c.b16 %v933, %v930
    %v1066 = vpack.c.b16 %v937, %v934
    %v1067 = vpack.c.b16 %v938, %v935
    %v1068 = vpack.c.b16 %v939, %v936
    %v1069 = vpack.c.b16 %v943, %v940
    %v1070 = vpack.c.b16 %v944, %v941
    %v1071 = vpack.c.b16 %v945, %v942
    %v1072 = vpack.c.b16 %v949, %v946
    %v1073 = vpack.c.b16 %v950, %v947
    %v1074 = vpack.c.b16 %v951, %v948
    %v1075 = vpack.c.b16 %v955, %v952
    %v1076 = vpack.c.b16 %v956, %v953
    %v1077 = vpack.c.b16 %v957, %v954
    %v1078 = vpack.c.b16 %v961, %v958
    %v1079 = vpack.c.b16 %v962, %v959
    %v1080 = vpack.c.b16 %v963, %v960
    %v1081 = vpack.c.b16 %v967, %v964
    %v1082 = vpack.c.b16 %v968, %v965
    %v1083 = vpack.c.b16 %v969, %v966
    %v1084 = vpack.c.b16 %v973, %v970
    %v1085 = vpack.c.b16 %v974, %v971
    %v1086 = vpack.c.b16 %v975, %v972
    %v1087 = vpack.c.b16 %v979, %v976
    %v1088 = vpack.c.b16 %v980, %v977
    %v1089 = vpack.c.b16 %v981, %v978
    %v1090 = vpack.c.b16 %v985, %v982
    %v1091 = vpack.c.b16 %v986, %v983
    %v1092 = vpack.c.b16 %v987, %v984
    %v1093 = vpack.c.b16 %v991, %v988
    %v1094 = vpack.c.b16 %v992, %v989
    %v1095 = vpack.c.b16 %v993, %v990
    %v1096 = vpack.c.b16 %v997, %v994
    %v1097 = vpack.c.b16 %v998, %v995
    %v1098 = vpack.c.b16 %v999, %v996
    %v1099 = vpack.c.b16 %v1003, %v1000
    %v1100 = vpack.c.b16 %v1004, %v1001
    %v1101 = vpack.c.b16 %v1005, %v1002
    %v1102 = vpack.c.b16 %v1009, %v1006
    %v1103 = vpack.c.b16 %v1010, %v1007
    %v1104 = vpack.c.b16 %v1011, %v1008
    %v1105 = vpack.c.b16 %v1015, %v1012
    %v1106 = vpack.c.b16 %v1016, %v1013
    %v1107 = vpack.c.b16 %v1017, %v1014
    %v1108 = vpack.c.b16 %v1021, %v1018
    %v1109 = vpack.c.b16 %v1022, %v1019
    %v1110 = vpack.c.b16 %v1023, %v1020
    %v1111 = vpack.c.b16 %v1027, %v1024
    %v1112 = vpack.c.b16 %v1028, %v1025
    %v1113 = vpack.c.b16 %v1029, %v1026
    %v1114 = vpack.c.b16 %v1033, %v1030
    %v1115 = vpack.c.b16 %v1034, %v1031
    %v1116 = vpack.c.b16 %v1035, %v1032
    %v1117 = vpack.c.b16 %v1039, %v1036
    %v1118 = vpack.c.b16 %v1040, %v1037
    %v1119 = vpack.c.b16 %v1041, %v1038
    %v1120 = vpack.c.b16 %v1045, %v1042
    %v1121 = vpack.c.b16 %v1046, %v1043
    %v1122 = vpack.c.b16 %v1047, %v1044
    %v1123 = vpack.c.b16 %v1051, %v1048
    %v1124 = vpack.c.b16 %v1052, %v1049
    %v1125 = vpack.c.b16 %v1053, %v1050
    %1198 = vmatprep.subr.bf16.mxu0 %v1055
    %1199 = vmatpush1.bf16.msra.mxu0 %v1054
    %1200 = vmatprep.subr.bf16.mxu0 %v1058
    %1201 = vmatpush1.bf16.msra.mxu0 %v1057
    %1202 = vmatprep.subr.bf16.mxu0 %v1061
    %1203 = vmatpush1.bf16.msra.mxu0 %v1060
    %1204 = vmatprep.subr.bf16.mxu0 %v1064
    %1205 = vmatpush1.bf16.msra.mxu0 %v1063
    %1206 = vmatprep.subr.bf16.mxu0 %v1067
    %1207 = vmatpush1.bf16.msra.mxu0 %v1066
    %1208 = vmatprep.subr.bf16.mxu0 %v1070
    %1209 = vmatpush1.bf16.msra.mxu0 %v1069
    %1210 = vmatprep.subr.bf16.mxu0 %v1073
    %1211 = vmatpush1.bf16.msra.mxu0 %v1072
    %1212 = vmatprep.subr.bf16.mxu0 %v1076
    %1213 = vmatpush1.bf16.msra.mxu0 %v1075
    %1214 = vmatprep.subr.bf16.mxu0 %v1079
    %1215 = vmatpush1.bf16.msra.mxu0 %v1078
    %1216 = vmatprep.subr.bf16.mxu0 %v1082
    %1217 = vmatpush1.bf16.msra.mxu0 %v1081
    %1218 = vmatprep.subr.bf16.mxu0 %v1085
    %1219 = vmatpush1.bf16.msra.mxu0 %v1084
    %1220 = vmatprep.subr.bf16.mxu0 %v1088
    %1221 = vmatpush1.bf16.msra.mxu0 %v1087
    %1222 = vmatprep.subr.bf16.mxu0 %v1091
    %1223 = vmatpush1.bf16.msra.mxu0 %v1090
    %1224 = vmatprep.subr.bf16.mxu0 %v1094
    %1225 = vmatpush1.bf16.msra.mxu0 %v1093
    %1226 = vmatprep.subr.bf16.mxu0 %v1097
    %1227 = vmatpush1.bf16.msra.mxu0 %v1096
    %1228 = vmatprep.subr.bf16.mxu0 %v1100
    %1229 = vmatpush1.bf16.msra.mxu0 %v1099
    %1230 = vmatprep.mubr.bf16.mxu0 %v699
    %1231 = vmatmul.mubr.bf16.gmra.mrb[0].mxu0 %v698
    %v1232 = vpop.f32.mrb[0].mxu0
    %v1233 = vadd.f32 %v802, %v1232
    %v1234 = vpop.f32.mrb[0].mxu0
    %v1235 = vadd.f32 %v806, %v1234
    %v1236 = vpop.f32.mrb[0].mxu0
    %v1237 = vpop.f32.mrb[0].mxu0
    %1238 = vdwg.mxu0
    %1239 = vmatprep.subr.bf16.mxu0 %v1103
    %1240 = vmatpush1.bf16.msra.mxu0 %v1102
    %1241 = vmatprep.subr.bf16.mxu0 %v1106
    %1242 = vmatpush1.bf16.msra.mxu0 %v1105
    %1243 = vmatprep.subr.bf16.mxu0 %v1109
    %1244 = vmatpush1.bf16.msra.mxu0 %v1108
    %1245 = vmatprep.subr.bf16.mxu0 %v1112
    %1246 = vmatpush1.bf16.msra.mxu0 %v1111
    %1247 = vmatprep.subr.bf16.mxu0 %v1115
    %1248 = vmatpush1.bf16.msra.mxu0 %v1114
    %1249 = vmatprep.subr.bf16.mxu0 %v1118
    %1250 = vmatpush1.bf16.msra.mxu0 %v1117
    %1251 = vmatprep.subr.bf16.mxu0 %v1121
    %1252 = vmatpush1.bf16.msra.mxu0 %v1120
    %1253 = vmatprep.subr.bf16.mxu0 %v1124
    %1254 = vmatpush1.bf16.msra.mxu0 %v1123
    %1255 = vmatprep.subr.bf16.mxu0 0
    %1256 = vmatpush1.bf16.msra.mxu0 0
    %1257 = vmatprep.subr.bf16.mxu0 0
    %1258 = vmatpush1.bf16.msra.mxu0 0
    %1259 = vmatprep.subr.bf16.mxu0 0
    %1260 = vmatpush1.bf16.msra.mxu0 0
    %1261 = vmatprep.subr.bf16.mxu0 0
    %1262 = vmatpush1.bf16.msra.mxu0 0
    %1263 = vmatprep.subr.bf16.mxu0 0
    %1264 = vmatpush1.bf16.msra.mxu0 0
    %1265 = vmatprep.subr.bf16.mxu0 0
    %1266 = vmatpush1.bf16.msra.mxu0 0
    %1267 = vmatprep.subr.bf16.mxu0 0
    %1268 = vmatpush1.bf16.msra.mxu0 0
    %1269 = vmatprep.subr.bf16.mxu0 0
    %1270 = vmatpush1.bf16.msra.mxu0 0
    %1271 = vmatprep.mubr.bf16.mxu0 0
    %1272 = vmatmul.mubr.bf16.gmra.mrb[0].mxu0 %v700
    %v1273 = vpop.f32.mrb[0].mxu0
    %v1274 = vadd.f32 %v1233, %v1273
    %v1275 = vpop.f32.mrb[0].mxu0
    %v1276 = vadd.f32 %v1235, %v1275
    %v1277 = vpop.f32.mrb[0].mxu0
    %v1278 = vpop.f32.mrb[0].mxu0
    %1279 = vdwg.mxu0
    %1280 = vmatprep.subr.bf16.mxu0 0
    %1281 = vmatpush1.bf16.msra.mxu0 %v1056
    %1282 = vmatprep.subr.bf16.mxu0 0
    %1283 = vmatpush1.bf16.msra.mxu0 %v1059
    %1284 = vmatprep.subr.bf16.mxu0 0
    %1285 = vmatpush1.bf16.msra.mxu0 %v1062
    %1286 = vmatprep.subr.bf16.mxu0 0
    %1287 = vmatpush1.bf16.msra.mxu0 %v1065
    %1288 = vmatprep.subr.bf16.mxu0 0
    %1289 = vmatpush1.bf16.msra.mxu0 %v1068
    %1290 = vmatprep.subr.bf16.mxu0 0
    %1291 = vmatpush1.bf16.msra.mxu0 %v1071
    %1292 = vmatprep.subr.bf16.mxu0 0
    %1293 = vmatpush1.bf16.msra.mxu0 %v1074
    %1294 = vmatprep.subr.bf16.mxu0 0
    %1295 = vmatpush1.bf16.msra.mxu0 %v1077
    %1296 = vmatprep.subr.bf16.mxu0 0
    %1297 = vmatpush1.bf16.msra.mxu0 %v1080
    %1298 = vmatprep.subr.bf16.mxu0 0
    %1299 = vmatpush1.bf16.msra.mxu0 %v1083
    %1300 = vmatprep.subr.bf16.mxu0 0
    %1301 = vmatpush1.bf16.msra.mxu0 %v1086
    %1302 = vmatprep.subr.bf16.mxu0 0
    %1303 = vmatpush1.bf16.msra.mxu0 %v1089
    %1304 = vmatprep.subr.bf16.mxu0 0
    %1305 = vmatpush1.bf16.msra.mxu0 %v1092
    %1306 = vmatprep.subr.bf16.mxu0 0
    %1307 = vmatpush1.bf16.msra.mxu0 %v1095
    %1308 = vmatprep.subr.bf16.mxu0 0
    %1309 = vmatpush1.bf16.msra.mxu0 %v1098
    %1310 = vmatprep.subr.bf16.mxu0 0
    %1311 = vmatpush1.bf16.msra.mxu0 %v1101
    %1312 = vmatprep.mubr.bf16.mxu0 %v699
    %1313 = vmatmul.mubr.bf16.gmra.mrb[0].mxu0 %v698
    %v1314 = vpop.f32.mrb[0].mxu0
    %v1315 = vadd.f32 %v810, %v1314
    %v1316 = vpop.f32.mrb[0].mxu0
    %v1317 = vpop.f32.mrb[0].mxu0
    %v1318 = vpop.f32.mrb[0].mxu0
    %1319 = vdwg.mxu0
    %1320 = vmatprep.subr.bf16.mxu0 0
    %1321 = vmatpush1.bf16.msra.mxu0 %v1104
    %1322 = vmatprep.subr.bf16.mxu0 0
    %1323 = vmatpush1.bf16.msra.mxu0 %v1107
    %1324 = vmatprep.subr.bf16.mxu0 0
    %1325 = vmatpush1.bf16.msra.mxu0 %v1110
    %1326 = vmatprep.subr.bf16.mxu0 0
    %1327 = vmatpush1.bf16.msra.mxu0 %v1113
    %1328 = vmatprep.subr.bf16.mxu0 0
    %1329 = vmatpush1.bf16.msra.mxu0 %v1116
    %1330 = vmatprep.subr.bf16.mxu0 0
    %1331 = vmatpush1.bf16.msra.mxu0 %v1119
    %1332 = vmatprep.subr.bf16.mxu0 0
    %1333 = vmatpush1.bf16.msra.mxu0 %v1122
    %1334 = vmatprep.subr.bf16.mxu0 0
    %1335 = vmatpush1.bf16.msra.mxu0 %v1125
    %1336 = vmatprep.subr.bf16.mxu0 0
    %1337 = vmatpush1.bf16.msra.mxu0 0
    %1338 = vmatprep.subr.bf16.mxu0 0
    %1339 = vmatpush1.bf16.msra.mxu0 0
    %1340 = vmatprep.subr.bf16.mxu0 0
    %1341 = vmatpush1.bf16.msra.mxu0 0
    %1342 = vmatprep.subr.bf16.mxu0 0
    %1343 = vmatpush1.bf16.msra.mxu0 0
    %1344 = vmatprep.subr.bf16.mxu0 0
    %1345 = vmatpush1.bf16.msra.mxu0 0
    %1346 = vmatprep.subr.bf16.mxu0 0
    %1347 = vmatpush1.bf16.msra.mxu0 0
    %1348 = vmatprep.subr.bf16.mxu0 0
    %1349 = vmatpush1.bf16.msra.mxu0 0
    %1350 = vmatprep.subr.bf16.mxu0 0
    %1351 = vmatpush1.bf16.msra.mxu0 0
    %1352 = vmatprep.mubr.bf16.mxu0 0
    %1353 = vmatmul.mubr.bf16.gmra.mrb[0].mxu0 %v700
    %v1354 = vpop.f32.mrb[0].mxu0
    %v1355 = vadd.f32 %v1315, %v1354
    %v1356 = vpop.f32.mrb[0].mxu0
    %v1357 = vpop.f32.mrb[0].mxu0
    %v1358 = vpop.f32.mrb[0].mxu0
    %1359 = vdwg.mxu0
    %1360 = vst [vmem:[%s11] sm:$0xff] %v1274
    %v1361 = vld [vmem:[%s9] sm:$0x1]
    %v1362 = vtanh.pop %v1276
    %v1363 = vadd.f32 %v1362, 0.5
    %v1364 = vld [vmem:[%s10] sm:$0x1]
    %v1366 = vlaneseq
    %v1367 = vshrl.u32 %v1366, 7
    %v1368 = vsub.s32 0, %v1367
    %v1369 = vrot.slane %v1364, %v1368
    %v1371 = vmul.f32 %v1363, %v1369
    %v1373 = vlaneseq
    %v1374 = vshrl.u32 %v1373, 7
    %v1375 = vsub.s32 0, %v1374
    %v1376 = vrot.slane %v1361, %v1375
    %v1378 = vadd.f32 %v1376, %v1371
    %1379 = vst [vmem:[%s11 + $0x8] sm:$0xff] %v1378
    %v1380 = vmax.f32 %v1355, 0.0
    %v1381 = vand.u32 2147483647, %v1355
    %v1382 = vsub.f32 0.0, %v1381
    %v1383 = vmul.f32 %v1382, 1.442695
    %v1384 = vpow.pop %v1383
    %v1385 = vadd.f32 %v1384, 1.0
    %v1386 = vlog2.pop %v1385
    %v1387 = vmul.f32 %v1386, 0.6931472
    %v1388 = vmul.f32 -0.5, %v1384
    %v1389 = vadd.f32 %v1388, 1.0
    %v1390 = vmul.f32 %v1389, %v1384
    %v1391 = vand.u32 2147483647, %v1384
    %vm1392 = vcmp.lt.f32.partialorder %v1391, 0.0004427343
    %v1393 = vsel %vm1392, %v1390, %v1387
    %v1394 = vadd.f32 %v1380, %v1393
    %v1395 = vadd.f32 %v1394, 1.1920929e-07
    %1396 = vst [vmem:[%s11 + $0x10] sm:$0xff] %v1395
    // Predicated region
    $region62: #{forward.1} parent=1 // pred_check
      _
    $region63: #{forward.1} parent=1 // pred_check_branch
      %1398 = sbr.rel (0) target = $region65
    $region64: #{forward.1} parent=1 // pred_region
      _
    $region65: #{forward.1} parent=1 // pred_fallthru
      _
    // Predicated region
    $region66: #{forward.1} parent=1 // pred_check
      _
    $region67: #{forward.1} parent=1 // pred_check_branch
      %1400 = sbr.rel (0) target = $region69
    $region68: #{forward.1} parent=1 // pred_region
      _
    $region69: #{forward.1} parent=1 // pred_fallthru
      _
    %1401 = vsyncpa [#allocation3], 1
    %1402 = vsyncpa [#allocation5], 1
    %1403 = vsyncpa [#allocation8], 1

</llo_original>
